<compile_context>
chip_gen: v7x
topology: tpu7x:2x2x1
jax: 0.10.0
libtpu: 0.0.40
codegen_flags: <defaults>
</compile_context>

<pallas_src>
import jax
import jax.numpy as jnp
import numpy as np
from jax import lax
from jax.experimental import pallas as pl
from jax.experimental.pallas import tpu as pltpu

HIDDEN = 256       # convDa always has 256 output channels in the PyTorch module
BN_EPS = 1e-5
NORM_EPS = 1e-12   # F.normalize default


# ----------------------------- kernel 1: conv head ---------------------------
def _make_conv_kernel(tile_h, W, cin, hidden, cout):
    tm = tile_h * W

    def kernel(x_ref, wa_ref, ba_ref, wb_ref, bb_ref, raw_ref):
        # x_ref : (1, H+2, W+2, Cin) bf16   zero-padded NHWC image (resident per n)
        # wa_ref: (9, Cin, 256)      bf16   3x3 taps, k = 3*dy + dx
        # ba_ref: (1, 256)           f32    convDa bias (pre-ReLU, cannot fold)
        # wb_ref: (256, Cout)        bf16   convDb weight with bnDa/bnDb folded in
        # bb_ref: (1, Cout)          f32    folded bias
        # raw_ref:(1, tile_h*W, Cout) f32   desc_raw rows for this tile
        t = pl.program_id(1)
        row0 = pl.multiple_of(t * tile_h, tile_h)
        # padded rows [row0, row0 + tile_h + 2) give the 3x3 halo for this tile
        xt = x_ref[0, pl.ds(row0, tile_h + 2), :, :]          # (tile_h+2, W+2, Cin)

        acc = None
        for dy in range(3):
            for dx in range(3):
                win = xt[dy:dy + tile_h, dx:dx + W, :].reshape(tm, cin)
                part = jnp.dot(win, wa_ref[3 * dy + dx],
                               preferred_element_type=jnp.float32)
                acc = part if acc is None else acc + part     # f32 accumulation

        h = jnp.maximum(acc + ba_ref[...], 0.0)               # bias + ReLU (f32)
        o = jnp.dot(h.astype(jnp.bfloat16), wb_ref[...],
                    preferred_element_type=jnp.float32) + bb_ref[...]
        raw_ref[0] = o                                        # (tile_h*W, Cout)

    return kernel


# ----------------------- kernel 2: upsample + normalize ----------------------
def _make_upsample_kernel(tile_ho, H, W, cout, g):
    def kernel(o_ref, ah_ref, desc_ref):
        # o_ref   : (1, H, (W+2)*Cout) bf16  desc_raw, columns edge-padded
        # ah_ref  : (tile_ho, H)       f32   rows of the bilinear row-matrix
        # desc_ref: (1, tile_ho, g*W*Cout) f32
        ah = ah_ref[...].astype(jnp.bfloat16)
        d1 = jnp.dot(ah, o_ref[0], preferred_element_type=jnp.float32)
        d1 = d1.reshape(tile_ho, W + 2, cout)                 # row-upsampled, padded cols

        for r in range(g):                                    # column phases (static)
            s = (r + 0.5) / g - 0.5
            if s < 0.0:
                off, wl, wr = 0, -s, 1.0 + s
            else:
                off, wl, wr = 1, 1.0 - s, s
            ph = wl * d1[:, off:off + W, :] + wr * d1[:, off + 1:off + 1 + W, :]
            ssq = jnp.sum(ph * ph, axis=-1, keepdims=True)
            ph = ph * lax.rsqrt(jnp.maximum(ssq, NORM_EPS * NORM_EPS))
            desc_ref[0, :, r * W * cout:(r + 1) * W * cout] = ph.reshape(tile_ho, W * cout)

    return kernel


# --------------------------------- helpers -----------------------------------
def bilinear_matrix(n_in, scale):
    """1-D bilinear upsample matrix matching F.interpolate(align_corners=False)."""
    n_out = n_in * scale
    i = jnp.arange(n_out, dtype=jnp.float32)
    src = (i + 0.5) / float(scale) - 0.5
    src = jnp.maximum(src, 0.0)
    i0 = jnp.minimum(jnp.floor(src).astype(jnp.int32), n_in - 1)
    i1 = jnp.minimum(i0 + 1, n_in - 1)
    w1 = src - i0.astype(jnp.float32)
    w0 = 1.0 - w1
    rows = jnp.arange(n_out)
    A = jnp.zeros((n_out, n_in), jnp.float32)
    A = A.at[rows, i0].add(w0)
    A = A.at[rows, i1].add(w1)
    return A


def _fold_bn(gamma, beta, mean, var):
    s = gamma / jnp.sqrt(var + BN_EPS)
    t = beta - mean * s
    return s, t


def _pick_row_tile(total_rows, bytes_per_row, budget_bytes=2 << 20, align=8):
    divisors = [d for d in range(1, total_rows + 1) if total_rows % d == 0]
    ok = [d for d in divisors
          if (d % align == 0 or d == total_rows) and d * bytes_per_row <= budget_bytes]
    if ok:
        return max(ok)
    aligned = [d for d in divisors if d % align == 0 or d == total_rows]
    return min(aligned)


# --------------------------------- wrapper -----------------------------------
def descriptor_head(x_nchw, params, grid_size, *, tile_h=None, tile_ho=None):
    """Forward pass of DescriptorHead. Input/outputs are NCHW (like PyTorch)."""
    N, Cin, H, W = x_nchw.shape
    Cout = params["wb"].shape[0]
    g = int(grid_size)
    Ho, Wo = H * g, W * g

    if tile_h is None:
        tile_h = _pick_row_tile(H, W * HIDDEN * 4)          # f32 hidden bytes per row
    if tile_ho is None:
        tile_ho = _pick_row_tile(Ho, g * W * Cout * 4)      # f32 desc bytes per out row
    assert H % tile_h == 0 and ((tile_h * W) % 8 == 0 or tile_h == H)
    assert Ho % tile_ho == 0 and (tile_ho % 8 == 0 or tile_ho == Ho)

    # ---- fold bnDa + bnDb into convDb (everything after ReLU is linear) ----
    sa, ta = _fold_bn(params["gamma_a"], params["beta_a"], params["mean_a"], params["var_a"])
    sb, tb = _fold_bn(params["gamma_b"], params["beta_b"], params["mean_b"], params["var_b"])
    wa = jnp.transpose(params["wa"], (2, 3, 1, 0)).reshape(9, Cin, HIDDEN)   # taps (dy,dx)
    wb2d = params["wb"][:, :, 0, 0].T                                        # (256, Cout)
    wbf = (sa[:, None] * wb2d) * sb[None, :]
    bbf = (jnp.dot(ta, wb2d) + params["bb"]) * sb + tb

    wa_b = wa.astype(jnp.bfloat16)
    wbf_b = wbf.astype(jnp.bfloat16)
    ba_r = params["ba"].reshape(1, HIDDEN).astype(jnp.float32)
    bbf_r = bbf.reshape(1, Cout).astype(jnp.float32)

    # ---- zero-padded NHWC input in bf16 (conv padding=1) ----
    x = jnp.transpose(x_nchw, (0, 2, 3, 1)).astype(jnp.bfloat16)
    xpad = jnp.pad(x, ((0, 0), (1, 1), (1, 1), (0, 0)))

    cparams = pltpu.CompilerParams(
        dimension_semantics=("parallel", "parallel"),
        vmem_limit_bytes=32 * 1024 * 1024)

    # ------------------- kernel 1: convDa + ReLU + folded convDb -------------
    conv_kernel = _make_conv_kernel(tile_h, W, Cin, HIDDEN, Cout)
    raw_flat = pl.pallas_call(
        conv_kernel,
        out_shape=jax.ShapeDtypeStruct((N, H * W, Cout), jnp.float32),
        grid_spec=pltpu.PrefetchScalarGridSpec(
            num_scalar_prefetch=0,
            grid=(N, H // tile_h),
            in_specs=[
                pl.BlockSpec((1, H + 2, W + 2, Cin), lambda n, t: (n, 0, 0, 0)),
                pl.BlockSpec((9, Cin, HIDDEN), lambda n, t: (0, 0, 0)),
                pl.BlockSpec((1, HIDDEN), lambda n, t: (0, 0)),
                pl.BlockSpec((HIDDEN, Cout), lambda n, t: (0, 0)),
                pl.BlockSpec((1, Cout), lambda n, t: (0, 0)),
            ],
            out_specs=pl.BlockSpec((1, tile_h * W, Cout), lambda n, t: (n, t, 0)),
        ),
        compiler_params=cparams,
    )(xpad, wa_b, ba_r, wbf_b, bbf_r)

    # ------------- kernel 2: separable bilinear upsample + normalize ---------
    o4 = raw_flat.reshape(N, H, W, Cout)
    o_pad = jnp.pad(o4, ((0, 0), (0, 0), (1, 1), (0, 0)), mode="edge")   # column clamp
    o_pad = o_pad.reshape(N, H, (W + 2) * Cout).astype(jnp.bfloat16)
    Ah = bilinear_matrix(H, g)                                            # (Ho, H) f32

    up_kernel = _make_upsample_kernel(tile_ho, H, W, Cout, g)
    desc3 = pl.pallas_call(
        up_kernel,
        out_shape=jax.ShapeDtypeStruct((N, Ho, g * W * Cout), jnp.float32),
        grid_spec=pltpu.PrefetchScalarGridSpec(
            num_scalar_prefetch=0,
            grid=(N, Ho // tile_ho),
            in_specs=[
                pl.BlockSpec((1, H, (W + 2) * Cout), lambda n, t: (n, 0, 0)),
                pl.BlockSpec((tile_ho, H), lambda n, t: (t, 0)),
            ],
            out_specs=pl.BlockSpec((1, tile_ho, g * W * Cout), lambda n, t: (n, t, 0)),
        ),
        compiler_params=cparams,
    )(o_pad, Ah)

    # ---- back to NCHW (XLA glue) ----
    desc_raw = jnp.transpose(o4, (0, 3, 1, 2))                            # (N,Cout,H,W)
    desc = desc3.reshape(N, Ho, g, W, Cout)                               # (r,w,c) order
    desc = jnp.transpose(desc, (0, 4, 1, 3, 2)).reshape(N, Cout, Ho, Wo)  # P = w*g + r
    return {"desc_raw": desc_raw, "desc": desc}


# ------------------------- pure-JAX reference check --------------------------
def reference(x_nchw, params, grid_size):
    N, Cin, H, W = x_nchw.shape
    sa, ta = _fold_bn(params["gamma_a"], params["beta_a"], params["mean_a"], params["var_a"])
    sb, tb = _fold_bn(params["gamma_b"], params["beta_b"], params["mean_b"], params["var_b"])
    dn = ("NCHW", "OIHW", "NCHW")
    h = lax.conv_general_dilated(x_nchw, params["wa"], (1, 1), ((1, 1), (1, 1)),
                                 dimension_numbers=dn, precision=lax.Precision.HIGHEST)
    h = jnp.maximum(h + params["ba"][None, :, None, None], 0.0)
    h = h * sa[None, :, None, None] + ta[None, :, None, None]
    o = lax.conv_general_dilated(h, params["wb"], (1, 1), ((0, 0), (0, 0)),
                                 dimension_numbers=dn, precision=lax.Precision.HIGHEST)
    o = (o + params["bb"][None, :, None, None]) * sb[None, :, None, None] + tb[None, :, None, None]
    Ah, Aw = bilinear_matrix(H, grid_size), bilinear_matrix(W, grid_size)
    up = jnp.einsum("Oh,nchw,Pw->ncOP", Ah, o, Aw, precision=lax.Precision.HIGHEST)
    nrm = jnp.sqrt(jnp.sum(up * up, axis=1, keepdims=True))
    return o, up / jnp.maximum(nrm, NORM_EPS)


if __name__ == "__main__":
    N, Cin, H, W = 2, 4, 16, 16
    Cout, grid_size = 16, 2

    key = jax.random.PRNGKey(0)
    k = jax.random.split(key, 10)
    x = jax.random.normal(k[0], (N, Cin, H, W), jnp.float32)
    params = dict(
        wa=0.1 * jax.random.normal(k[1], (HIDDEN, Cin, 3, 3), jnp.float32),
        ba=0.1 * jax.random.normal(k[2], (HIDDEN,), jnp.float32),
        gamma_a=1.0 + 0.1 * jax.random.normal(k[3], (HIDDEN,), jnp.float32),
        beta_a=0.1 * jax.random.normal(k[4], (HIDDEN,), jnp.float32),
        mean_a=jnp.zeros((HIDDEN,), jnp.float32),
        var_a=jnp.ones((HIDDEN,), jnp.float32),
        wb=0.1 * jax.random.normal(k[5], (Cout, HIDDEN, 1, 1), jnp.float32),
        bb=0.1 * jax.random.normal(k[6], (Cout,), jnp.float32),
        gamma_b=1.0 + 0.1 * jax.random.normal(k[7], (Cout,), jnp.float32),
        beta_b=0.1 * jax.random.normal(k[8], (Cout,), jnp.float32),
        mean_b=jnp.zeros((Cout,), jnp.float32),
        var_b=jnp.ones((Cout,), jnp.float32),
    )

    # explicit small tiles so the multi-tile spatial pipeline is exercised
    out = descriptor_head(x, params, grid_size, tile_h=8, tile_ho=16)
    jax.block_until_ready(out)

    assert out["desc_raw"].shape == (N, Cout, H, W)
    assert out["desc"].shape == (N, Cout, H * grid_size, W * grid_size)

    ref_raw, ref_desc = reference(x, params, grid_size)
    # tolerance accounts for bf16 MXU operands (accumulation is f32)
    np.testing.assert_allclose(np.asarray(out["desc_raw"]), np.asarray(ref_raw),
                               rtol=2e-2, atol=2e-2)
    np.testing.assert_allclose(np.asarray(out["desc"]), np.asarray(ref_desc),
                               rtol=2e-2, atol=2e-2)
    print("KERNEL_OK")
</pallas_src>

<mosaic_0001>
module attributes {stable_mosaic.version = 11 : i64} {
  func.func @kernel(%arg0: i32, %arg1: i32, %arg2: memref<1x18x18x4xbf16, #tpu.memory_space<vmem>>, %arg3: memref<9x4x256xbf16, #tpu.memory_space<vmem>>, %arg4: memref<1x256xf32, #tpu.memory_space<vmem>>, %arg5: memref<256x16xbf16, #tpu.memory_space<vmem>>, %arg6: memref<1x16xf32, #tpu.memory_space<vmem>>, %arg7: memref<1x128x16xf32, #tpu.memory_space<vmem>>) attributes {dimension_semantics = [#tpu.dimension_semantics<parallel>, #tpu.dimension_semantics<parallel>], iteration_bounds = array<i64: 2, 2>, scalar_prefetch = 0 : i64, scratch_operands = 0 : i64, tpu.core_type = #tpu.core_type<tc>, window_params = [{transform_indices = @transform_0, window_bounds = array<i64: 1, 18, 18, 4>}, {pipeline_mode = #tpu.pipeline_mode<synchronous>, transform_indices = @transform_1, window_bounds = array<i64: 9, 4, 256>}, {pipeline_mode = #tpu.pipeline_mode<synchronous>, transform_indices = @transform_2, window_bounds = array<i64: 1, 256>}, {pipeline_mode = #tpu.pipeline_mode<synchronous>, transform_indices = @transform_3, window_bounds = array<i64: 256, 16>}, {pipeline_mode = #tpu.pipeline_mode<synchronous>, transform_indices = @transform_4, window_bounds = array<i64: 1, 16>}, {transform_indices = @transform_5, window_bounds = array<i64: 1, 128, 16>}]} {
    %c8_i32 = arith.constant 8 : i32
    %0 = arith.muli %arg1, %c8_i32 : i32
    %1 = tpu.assume_multiple %0, 8 : i32
    %c0 = arith.constant 0 : index
    %2 = arith.index_cast %1 : i32 to index
    %c0_0 = arith.constant 0 : index
    %c0_1 = arith.constant 0 : index
    %3 = vector.load %arg2[%c0, %2, %c0_0, %c0_1] : memref<1x18x18x4xbf16, #tpu.memory_space<vmem>>, vector<1x10x18x4xbf16>
    %4 = vector.shape_cast %3 : vector<1x10x18x4xbf16> to vector<10x18x4xbf16>
    %5 = vector.extract_strided_slice %4 {offsets = [0, 0, 0], sizes = [8, 16, 4], strides = [1, 1, 1]} : vector<10x18x4xbf16> to vector<8x16x4xbf16>
    %6 = vector.shape_cast %5 : vector<8x16x4xbf16> to vector<128x4xbf16>
    %c0_2 = arith.constant 0 : index
    %c0_3 = arith.constant 0 : index
    %c0_4 = arith.constant 0 : index
    %7 = vector.load %arg3[%c0_2, %c0_3, %c0_4] : memref<9x4x256xbf16, #tpu.memory_space<vmem>>, vector<1x4x256xbf16>
    %8 = vector.shape_cast %7 : vector<1x4x256xbf16> to vector<4x256xbf16>
    %cst = arith.constant dense<0.000000e+00> : vector<128x256xf32>
    %9 = tpu.matmul %6, %8, %cst {dimension_numbers = #tpu.dot_dimension_numbers<[1], [0], [0], [1], [0, 0, 1, 1], [], []>} : vector<128x4xbf16>, vector<4x256xbf16>, vector<128x256xf32> -> vector<128x256xf32>
    %10 = vector.extract_strided_slice %4 {offsets = [0, 1, 0], sizes = [8, 16, 4], strides = [1, 1, 1]} : vector<10x18x4xbf16> to vector<8x16x4xbf16>
    %11 = vector.shape_cast %10 : vector<8x16x4xbf16> to vector<128x4xbf16>
    %c1 = arith.constant 1 : index
    %c0_5 = arith.constant 0 : index
    %c0_6 = arith.constant 0 : index
    %12 = vector.load %arg3[%c1, %c0_5, %c0_6] : memref<9x4x256xbf16, #tpu.memory_space<vmem>>, vector<1x4x256xbf16>
    %13 = vector.shape_cast %12 : vector<1x4x256xbf16> to vector<4x256xbf16>
    %cst_7 = arith.constant dense<0.000000e+00> : vector<128x256xf32>
    %14 = tpu.matmul %11, %13, %cst_7 {dimension_numbers = #tpu.dot_dimension_numbers<[1], [0], [0], [1], [0, 0, 1, 1], [], []>} : vector<128x4xbf16>, vector<4x256xbf16>, vector<128x256xf32> -> vector<128x256xf32>
    %15 = arith.addf %9, %14 : vector<128x256xf32>
    %16 = vector.extract_strided_slice %4 {offsets = [0, 2, 0], sizes = [8, 16, 4], strides = [1, 1, 1]} : vector<10x18x4xbf16> to vector<8x16x4xbf16>
    %17 = vector.shape_cast %16 : vector<8x16x4xbf16> to vector<128x4xbf16>
    %c2 = arith.constant 2 : index
    %c0_8 = arith.constant 0 : index
    %c0_9 = arith.constant 0 : index
    %18 = vector.load %arg3[%c2, %c0_8, %c0_9] : memref<9x4x256xbf16, #tpu.memory_space<vmem>>, vector<1x4x256xbf16>
    %19 = vector.shape_cast %18 : vector<1x4x256xbf16> to vector<4x256xbf16>
    %cst_10 = arith.constant dense<0.000000e+00> : vector<128x256xf32>
    %20 = tpu.matmul %17, %19, %cst_10 {dimension_numbers = #tpu.dot_dimension_numbers<[1], [0], [0], [1], [0, 0, 1, 1], [], []>} : vector<128x4xbf16>, vector<4x256xbf16>, vector<128x256xf32> -> vector<128x256xf32>
    %21 = arith.addf %15, %20 : vector<128x256xf32>
    %22 = vector.extract_strided_slice %4 {offsets = [1, 0, 0], sizes = [8, 16, 4], strides = [1, 1, 1]} : vector<10x18x4xbf16> to vector<8x16x4xbf16>
    %23 = vector.shape_cast %22 : vector<8x16x4xbf16> to vector<128x4xbf16>
    %c3 = arith.constant 3 : index
    %c0_11 = arith.constant 0 : index
    %c0_12 = arith.constant 0 : index
    %24 = vector.load %arg3[%c3, %c0_11, %c0_12] : memref<9x4x256xbf16, #tpu.memory_space<vmem>>, vector<1x4x256xbf16>
    %25 = vector.shape_cast %24 : vector<1x4x256xbf16> to vector<4x256xbf16>
    %cst_13 = arith.constant dense<0.000000e+00> : vector<128x256xf32>
    %26 = tpu.matmul %23, %25, %cst_13 {dimension_numbers = #tpu.dot_dimension_numbers<[1], [0], [0], [1], [0, 0, 1, 1], [], []>} : vector<128x4xbf16>, vector<4x256xbf16>, vector<128x256xf32> -> vector<128x256xf32>
    %27 = arith.addf %21, %26 : vector<128x256xf32>
    %28 = vector.extract_strided_slice %4 {offsets = [1, 1, 0], sizes = [8, 16, 4], strides = [1, 1, 1]} : vector<10x18x4xbf16> to vector<8x16x4xbf16>
    %29 = vector.shape_cast %28 : vector<8x16x4xbf16> to vector<128x4xbf16>
    %c4 = arith.constant 4 : index
    %c0_14 = arith.constant 0 : index
    %c0_15 = arith.constant 0 : index
    %30 = vector.load %arg3[%c4, %c0_14, %c0_15] : memref<9x4x256xbf16, #tpu.memory_space<vmem>>, vector<1x4x256xbf16>
    %31 = vector.shape_cast %30 : vector<1x4x256xbf16> to vector<4x256xbf16>
    %cst_16 = arith.constant dense<0.000000e+00> : vector<128x256xf32>
    %32 = tpu.matmul %29, %31, %cst_16 {dimension_numbers = #tpu.dot_dimension_numbers<[1], [0], [0], [1], [0, 0, 1, 1], [], []>} : vector<128x4xbf16>, vector<4x256xbf16>, vector<128x256xf32> -> vector<128x256xf32>
    %33 = arith.addf %27, %32 : vector<128x256xf32>
    %34 = vector.extract_strided_slice %4 {offsets = [1, 2, 0], sizes = [8, 16, 4], strides = [1, 1, 1]} : vector<10x18x4xbf16> to vector<8x16x4xbf16>
    %35 = vector.shape_cast %34 : vector<8x16x4xbf16> to vector<128x4xbf16>
    %c5 = arith.constant 5 : index
    %c0_17 = arith.constant 0 : index
    %c0_18 = arith.constant 0 : index
    %36 = vector.load %arg3[%c5, %c0_17, %c0_18] : memref<9x4x256xbf16, #tpu.memory_space<vmem>>, vector<1x4x256xbf16>
    %37 = vector.shape_cast %36 : vector<1x4x256xbf16> to vector<4x256xbf16>
    %cst_19 = arith.constant dense<0.000000e+00> : vector<128x256xf32>
    %38 = tpu.matmul %35, %37, %cst_19 {dimension_numbers = #tpu.dot_dimension_numbers<[1], [0], [0], [1], [0, 0, 1, 1], [], []>} : vector<128x4xbf16>, vector<4x256xbf16>, vector<128x256xf32> -> vector<128x256xf32>
    %39 = arith.addf %33, %38 : vector<128x256xf32>
    %40 = vector.extract_strided_slice %4 {offsets = [2, 0, 0], sizes = [8, 16, 4], strides = [1, 1, 1]} : vector<10x18x4xbf16> to vector<8x16x4xbf16>
    %41 = vector.shape_cast %40 : vector<8x16x4xbf16> to vector<128x4xbf16>
    %c6 = arith.constant 6 : index
    %c0_20 = arith.constant 0 : index
    %c0_21 = arith.constant 0 : index
    %42 = vector.load %arg3[%c6, %c0_20, %c0_21] : memref<9x4x256xbf16, #tpu.memory_space<vmem>>, vector<1x4x256xbf16>
    %43 = vector.shape_cast %42 : vector<1x4x256xbf16> to vector<4x256xbf16>
    %cst_22 = arith.constant dense<0.000000e+00> : vector<128x256xf32>
    %44 = tpu.matmul %41, %43, %cst_22 {dimension_numbers = #tpu.dot_dimension_numbers<[1], [0], [0], [1], [0, 0, 1, 1], [], []>} : vector<128x4xbf16>, vector<4x256xbf16>, vector<128x256xf32> -> vector<128x256xf32>
    %45 = arith.addf %39, %44 : vector<128x256xf32>
    %46 = vector.extract_strided_slice %4 {offsets = [2, 1, 0], sizes = [8, 16, 4], strides = [1, 1, 1]} : vector<10x18x4xbf16> to vector<8x16x4xbf16>
    %47 = vector.shape_cast %46 : vector<8x16x4xbf16> to vector<128x4xbf16>
    %c7 = arith.constant 7 : index
    %c0_23 = arith.constant 0 : index
    %c0_24 = arith.constant 0 : index
    %48 = vector.load %arg3[%c7, %c0_23, %c0_24] : memref<9x4x256xbf16, #tpu.memory_space<vmem>>, vector<1x4x256xbf16>
    %49 = vector.shape_cast %48 : vector<1x4x256xbf16> to vector<4x256xbf16>
    %cst_25 = arith.constant dense<0.000000e+00> : vector<128x256xf32>
    %50 = tpu.matmul %47, %49, %cst_25 {dimension_numbers = #tpu.dot_dimension_numbers<[1], [0], [0], [1], [0, 0, 1, 1], [], []>} : vector<128x4xbf16>, vector<4x256xbf16>, vector<128x256xf32> -> vector<128x256xf32>
    %51 = arith.addf %45, %50 : vector<128x256xf32>
    %52 = vector.extract_strided_slice %4 {offsets = [2, 2, 0], sizes = [8, 16, 4], strides = [1, 1, 1]} : vector<10x18x4xbf16> to vector<8x16x4xbf16>
    %53 = vector.shape_cast %52 : vector<8x16x4xbf16> to vector<128x4xbf16>
    %c8 = arith.constant 8 : index
    %c0_26 = arith.constant 0 : index
    %c0_27 = arith.constant 0 : index
    %54 = vector.load %arg3[%c8, %c0_26, %c0_27] : memref<9x4x256xbf16, #tpu.memory_space<vmem>>, vector<1x4x256xbf16>
    %55 = vector.shape_cast %54 : vector<1x4x256xbf16> to vector<4x256xbf16>
    %cst_28 = arith.constant dense<0.000000e+00> : vector<128x256xf32>
    %56 = tpu.matmul %53, %55, %cst_28 {dimension_numbers = #tpu.dot_dimension_numbers<[1], [0], [0], [1], [0, 0, 1, 1], [], []>} : vector<128x4xbf16>, vector<4x256xbf16>, vector<128x256xf32> -> vector<128x256xf32>
    %57 = arith.addf %51, %56 : vector<128x256xf32>
    %c0_29 = arith.constant 0 : index
    %c0_30 = arith.constant 0 : index
    %58 = vector.load %arg4[%c0_29, %c0_30] : memref<1x256xf32, #tpu.memory_space<vmem>>, vector<1x256xf32>
    %59 = vector.broadcast %58 : vector<1x256xf32> to vector<128x256xf32>
    %60 = arith.addf %57, %59 : vector<128x256xf32>
    %cst_31 = arith.constant 0.000000e+00 : f32
    %61 = vector.broadcast %cst_31 : f32 to vector<128x256xf32>
    %62 = arith.maximumf %60, %61 : vector<128x256xf32>
    %63 = arith.truncf %62 : vector<128x256xf32> to vector<128x256xbf16>
    %c0_32 = arith.constant 0 : index
    %c0_33 = arith.constant 0 : index
    %64 = vector.load %arg5[%c0_32, %c0_33] : memref<256x16xbf16, #tpu.memory_space<vmem>>, vector<256x16xbf16>
    %cst_34 = arith.constant dense<0.000000e+00> : vector<128x16xf32>
    %65 = tpu.matmul %63, %64, %cst_34 {dimension_numbers = #tpu.dot_dimension_numbers<[1], [0], [0], [1], [0, 0, 1, 1], [], []>} : vector<128x256xbf16>, vector<256x16xbf16>, vector<128x16xf32> -> vector<128x16xf32>
    %c0_35 = arith.constant 0 : index
    %c0_36 = arith.constant 0 : index
    %66 = vector.load %arg6[%c0_35, %c0_36] : memref<1x16xf32, #tpu.memory_space<vmem>>, vector<1x16xf32>
    %67 = vector.broadcast %66 : vector<1x16xf32> to vector<128x16xf32>
    %68 = arith.addf %65, %67 : vector<128x16xf32>
    %c0_37 = arith.constant 0 : index
    %c0_38 = arith.constant 0 : index
    %c0_39 = arith.constant 0 : index
    %69 = vector.load %arg7[%c0_37, %c0_38, %c0_39] : memref<1x128x16xf32, #tpu.memory_space<vmem>>, vector<1x128x16xf32>
    %70 = vector.shape_cast %69 : vector<1x128x16xf32> to vector<128x16xf32>
    %71 = vector.shape_cast %68 : vector<128x16xf32> to vector<1x128x16xf32>
    tpu.vector_store %arg7[%c0_37, %c0_38, %c0_39], %71 {strides = array<i32>} : memref<1x128x16xf32, #tpu.memory_space<vmem>>, vector<1x128x16xf32>,
    return
  }
  func.func @transform_0(%arg0: i32, %arg1: i32) -> (i32, i32, i32, i32) {
    %c0_i32 = arith.constant 0 : i32
    %c0_i32_0 = arith.constant 0 : i32
    %c0_i32_1 = arith.constant 0 : i32
    %c0_i32_2 = arith.constant 0 : i32
    return %arg0, %c0_i32, %c0_i32_0, %c0_i32_1 : i32, i32, i32, i32
  }
  func.func @transform_1(%arg0: i32, %arg1: i32) -> (i32, i32, i32) {
    %c0_i32 = arith.constant 0 : i32
    %c0_i32_0 = arith.constant 0 : i32
    %c0_i32_1 = arith.constant 0 : i32
    %c0_i32_2 = arith.constant 0 : i32
    return %c0_i32, %c0_i32_0, %c0_i32_1 : i32, i32, i32
  }
  func.func @transform_2(%arg0: i32, %arg1: i32) -> (i32, i32) {
    %c0_i32 = arith.constant 0 : i32
    %c0_i32_0 = arith.constant 0 : i32
    %c0_i32_1 = arith.constant 0 : i32
    return %c0_i32, %c0_i32_0 : i32, i32
  }
  func.func @transform_3(%arg0: i32, %arg1: i32) -> (i32, i32) {
    %c0_i32 = arith.constant 0 : i32
    %c0_i32_0 = arith.constant 0 : i32
    %c0_i32_1 = arith.constant 0 : i32
    return %c0_i32, %c0_i32_0 : i32, i32
  }
  func.func @transform_4(%arg0: i32, %arg1: i32) -> (i32, i32) {
    %c0_i32 = arith.constant 0 : i32
    %c0_i32_0 = arith.constant 0 : i32
    %c0_i32_1 = arith.constant 0 : i32
    return %c0_i32, %c0_i32_0 : i32, i32
  }
  func.func @transform_5(%arg0: i32, %arg1: i32) -> (i32, i32, i32) {
    %c0_i32 = arith.constant 0 : i32
    %c0_i32_0 = arith.constant 0 : i32
    return %arg0, %arg1, %c0_i32 : i32, i32, i32
  }
}

</mosaic_0001>

<llo_original>
// kernel: tpu_custom_call.1
$region0: #{tpu_custom_call.1}
  #allocation0 [shape = 'u32[]', space=smem, size = 0x4, offset = 0x4, fixed_abs, tag = 'smem constant byte address 0x4 - core index']
  #allocation1 [shape = 'u32[144,128]{1,0:T(1,128)}', space=vmem, size = 0x12000, scoped, tag = 'internal scratch']
  %s0 = inlined_call_operand.vmem [shape: bf16[2,18,18,4], index: 0, kind: input, shape index: {}]
  %s1 = inlined_call_operand.vmem [shape: bf16[9,4,256], index: 1, kind: input, shape index: {}]
  %s2 = inlined_call_operand.vmem [shape: f32[1,256], index: 2, kind: input, shape index: {}]
  %s3 = inlined_call_operand.vmem [shape: bf16[256,16], index: 3, kind: input, shape index: {}]
  %s4 = inlined_call_operand.vmem [shape: f32[1,16], index: 4, kind: input, shape index: {}]
  %s5 = inlined_call_operand.vmem [shape: f32[2,256,16], index: 5, kind: output, shape index: {}]
  %s6 = sld [smem:[#allocation0]]
  $region53: #{tpu_custom_call.1} parent=0
    _
  %s8 = ssub.s32 1, %s6
  %s9 = scalar_select 0, %s8, %s6
  loop: start=0, step=1, limit=6
  $region2: #{tpu_custom_call.1} parent=0 // loop_pre_header
    _
  $region3: #{tpu_custom_call.1} parent=0 // loop_header
    %s11 = sphi 0, %s15
    %p12 = scmp.ge.s32.totalorder %s11, 6
    %s18 = sphi 0, %s30
    %s19 = sphi 0, %s26
    %s20 = sphi 0, %s18
    %s21 = sphi 0, %s19
    %s22 = sphi 0, %s20
    %s23 = sphi 0, %s21
    %s33 = sphi 0, %s35
    %s36 = sphi 0, %s33
    %s37 = sphi 0, %s36
    %s53 = sphi 0, %s37
    %s57 = sphi 0, %s57
    %s59 = sphi 0, %s57
    %s60 = sphi 0, %s59
    %s74 = sphi 0, %s60
    %s78 = sphi 0, %s78
    %s80 = sphi 0, %s78
    %s81 = sphi 0, %s80
    %s95 = sphi 0, %s81
    %s99 = sphi 0, %s99
    %s101 = sphi 0, %s99
    %s102 = sphi 0, %s101
    %s116 = sphi 0, %s102
    %s120 = sphi 0, %s120
    %s122 = sphi 0, %s120
    %s123 = sphi 0, %s122
    %s137 = sphi 0, %s123
    %s145 = sphi 0, %s147
    %s148 = sphi 0, %s145
    %s149 = sphi 0, %s148
    %s165 = sphi 0, %s149
  $region4: #{tpu_custom_call.1} parent=0 // loop_header_branch
    %14 = sbr.rel (%p12) target = $region8
  $region5: #{tpu_custom_call.1} parent=0 // loop_body
    %s16 = ssub.s32 %s11, 1
    %s17 = ssub.s32 %s11, 2
    %s24 = sadd.s32 1, %s19
    %p25 = scmp.ge.s32.totalorder %s24, 2
    %s26 = scalar_select %p25, 0, %s24
    %s27 = sadd.s32 1, %s18
    %s28 = scalar_select %p25, %s27, %s18
    %p29 = scmp.ge.s32.totalorder %s28, 2
    %s30 = scalar_select %p29, 0, %s28
    %s31 = ssub.s32 %s18, %s30
    %p32 = scmp.eq.s32.totalorder %s31, 0
    %s34 = sadd.s32 %s33, 1
    %s35 = scalar_select %p32, %s33, %s34
    %p38 = pneg %p32
    %p39 = scmp.eq.s32.totalorder %s11, 3
    %p40 = por %p38, %p39
    %p41 = scmp.ne.s32.totalorder %s33, %s36
    %p42 = scmp.eq.s32.totalorder %s11, 0
    %p43 = por %p41, %p42
    %p44 = scmp.ne.s32.totalorder %s33, %s36
    %p45 = scmp.eq.s32.totalorder %s16, 3
    %p46 = por %p44, %p45
    %p47 = scmp.ne.s32.totalorder %s36, %s37
    %p48 = scmp.eq.s32.totalorder %s16, 0
    %p49 = por %p47, %p48
    %p50 = scmp.ne.s32.totalorder %s36, %s37
    %p51 = scmp.eq.s32.totalorder %s17, 3
    %p52 = por %p50, %p51
    %p54 = scmp.ne.s32.totalorder %s37, %s53
    %p55 = scmp.eq.s32.totalorder %s17, 0
    %p56 = por %p54, %p55
    %s58 = sadd.s32 %s57, 1
    %p61 = scmp.eq.s32.totalorder %s11, 3
    %p62 = scmp.ne.s32.totalorder %s57, %s59
    %p63 = scmp.eq.s32.totalorder %s11, 0
    %p64 = por %p62, %p63
    %p65 = scmp.ne.s32.totalorder %s57, %s59
    %p66 = scmp.eq.s32.totalorder %s16, 3
    %p67 = por %p65, %p66
    %p68 = scmp.ne.s32.totalorder %s59, %s60
    %p69 = scmp.eq.s32.totalorder %s16, 0
    %p70 = por %p68, %p69
    %p71 = scmp.ne.s32.totalorder %s59, %s60
    %p72 = scmp.eq.s32.totalorder %s17, 3
    %p73 = por %p71, %p72
    %p75 = scmp.ne.s32.totalorder %s60, %s74
    %p76 = scmp.eq.s32.totalorder %s17, 0
    %p77 = por %p75, %p76
    %s79 = sadd.s32 %s78, 1
    %p82 = scmp.eq.s32.totalorder %s11, 3
    %p83 = scmp.ne.s32.totalorder %s78, %s80
    %p84 = scmp.eq.s32.totalorder %s11, 0
    %p85 = por %p83, %p84
    %p86 = scmp.ne.s32.totalorder %s78, %s80
    %p87 = scmp.eq.s32.totalorder %s16, 3
    %p88 = por %p86, %p87
    %p89 = scmp.ne.s32.totalorder %s80, %s81
    %p90 = scmp.eq.s32.totalorder %s16, 0
    %p91 = por %p89, %p90
    %p92 = scmp.ne.s32.totalorder %s80, %s81
    %p93 = scmp.eq.s32.totalorder %s17, 3
    %p94 = por %p92, %p93
    %p96 = scmp.ne.s32.totalorder %s81, %s95
    %p97 = scmp.eq.s32.totalorder %s17, 0
    %p98 = por %p96, %p97
    %s100 = sadd.s32 %s99, 1
    %p103 = scmp.eq.s32.totalorder %s11, 3
    %p104 = scmp.ne.s32.totalorder %s99, %s101
    %p105 = scmp.eq.s32.totalorder %s11, 0
    %p106 = por %p104, %p105
    %p107 = scmp.ne.s32.totalorder %s99, %s101
    %p108 = scmp.eq.s32.totalorder %s16, 3
    %p109 = por %p107, %p108
    %p110 = scmp.ne.s32.totalorder %s101, %s102
    %p111 = scmp.eq.s32.totalorder %s16, 0
    %p112 = por %p110, %p111
    %p113 = scmp.ne.s32.totalorder %s101, %s102
    %p114 = scmp.eq.s32.totalorder %s17, 3
    %p115 = por %p113, %p114
    %p117 = scmp.ne.s32.totalorder %s102, %s116
    %p118 = scmp.eq.s32.totalorder %s17, 0
    %p119 = por %p117, %p118
    %s121 = sadd.s32 %s120, 1
    %p124 = scmp.eq.s32.totalorder %s11, 3
    %p125 = scmp.ne.s32.totalorder %s120, %s122
    %p126 = scmp.eq.s32.totalorder %s11, 0
    %p127 = por %p125, %p126
    %p128 = scmp.ne.s32.totalorder %s120, %s122
    %p129 = scmp.eq.s32.totalorder %s16, 3
    %p130 = por %p128, %p129
    %p131 = scmp.ne.s32.totalorder %s122, %s123
    %p132 = scmp.eq.s32.totalorder %s16, 0
    %p133 = por %p131, %p132
    %p134 = scmp.ne.s32.totalorder %s122, %s123
    %p135 = scmp.eq.s32.totalorder %s17, 3
    %p136 = por %p134, %p135
    %p138 = scmp.ne.s32.totalorder %s123, %s137
    %p139 = scmp.eq.s32.totalorder %s17, 0
    %p140 = por %p138, %p139
    %s141 = ssub.s32 %s18, %s30
    %s142 = ssub.s32 %s19, %s26
    %s143 = sor.u32 %s141, %s142
    %p144 = scmp.eq.s32.totalorder %s143, 0
    %s146 = sadd.s32 %s145, 1
    %s147 = scalar_select %p144, %s145, %s146
    %p150 = pneg %p144
    %p151 = scmp.eq.s32.totalorder %s11, 3
    %p152 = por %p150, %p151
    %p153 = scmp.ne.s32.totalorder %s145, %s148
    %p154 = scmp.eq.s32.totalorder %s11, 0
    %p155 = por %p153, %p154
    %p156 = scmp.ne.s32.totalorder %s145, %s148
    %p157 = scmp.eq.s32.totalorder %s16, 3
    %p158 = por %p156, %p157
    %p159 = scmp.ne.s32.totalorder %s148, %s149
    %p160 = scmp.eq.s32.totalorder %s16, 0
    %p161 = por %p159, %p160
    %p162 = scmp.ne.s32.totalorder %s148, %s149
    %p163 = scmp.eq.s32.totalorder %s17, 3
    %p164 = por %p162, %p163
    %p166 = scmp.ne.s32.totalorder %s149, %s165
    %p167 = scmp.eq.s32.totalorder %s17, 0
    %p168 = por %p166, %p167
    %p169 = scmp.le.s32.totalorder 1, %s11
    %p170 = scmp.lt.s32.totalorder %s11, 5
    %p171 = pnand %p169, %p170
    %p172 = pneg %p171
    // Predicated region
    $region9: #{tpu_custom_call.1} parent=5 // pred_check
      _
    $region10: #{tpu_custom_call.1} parent=5 // pred_check_branch
      %174 = sbr.rel (%p171) target = $region12
    $region11: #{tpu_custom_call.1} parent=5 // pred_region
      %s175 = ssub.s32 %s11, 1
      // Predicated region
      $region13: #{tpu_custom_call.1} parent=11 // pred_check
        %p176 = pneg %p70
      $region14: #{tpu_custom_call.1} parent=11 // pred_check_branch
        %178 = sbr.rel (%p176) target = $region16
      $region15: #{tpu_custom_call.1} parent=11 // pred_region
        _
      $region16: #{tpu_custom_call.1} parent=11 // pred_fallthru
        _
      // Predicated region
      $region17: #{tpu_custom_call.1} parent=11 // pred_check
        %p179 = pneg %p91
      $region18: #{tpu_custom_call.1} parent=11 // pred_check_branch
        %181 = sbr.rel (%p179) target = $region20
      $region19: #{tpu_custom_call.1} parent=11 // pred_region
        _
      $region20: #{tpu_custom_call.1} parent=11 // pred_fallthru
        _
      // Predicated region
      $region21: #{tpu_custom_call.1} parent=11 // pred_check
        %p182 = pneg %p112
      $region22: #{tpu_custom_call.1} parent=11 // pred_check_branch
        %184 = sbr.rel (%p182) target = $region24
      $region23: #{tpu_custom_call.1} parent=11 // pred_region
        _
      $region24: #{tpu_custom_call.1} parent=11 // pred_fallthru
        _
      // Predicated region
      $region25: #{tpu_custom_call.1} parent=11 // pred_check
        %p185 = pneg %p133
      $region26: #{tpu_custom_call.1} parent=11 // pred_check_branch
        %187 = sbr.rel (%p185) target = $region28
      $region27: #{tpu_custom_call.1} parent=11 // pred_region
        _
      $region28: #{tpu_custom_call.1} parent=11 // pred_fallthru
        _
    $region12: #{tpu_custom_call.1} parent=5 // pred_fallthru
      _
    %p188 = scmp.lt.s32.totalorder %s11, 4
    // Predicated region
    $region29: #{tpu_custom_call.1} parent=5 // pred_check
      %p189 = pneg %p188
    $region30: #{tpu_custom_call.1} parent=5 // pred_check_branch
      %191 = sbr.rel (%p189) target = $region32
    $region31: #{tpu_custom_call.1} parent=5 // pred_region
      // Predicated region
      $region33: #{tpu_custom_call.1} parent=31 // pred_check
        %p192 = pneg %p43
      $region34: #{tpu_custom_call.1} parent=31 // pred_check_branch
        %194 = sbr.rel (%p192) target = $region36
      $region35: #{tpu_custom_call.1} parent=31 // pred_region
        %p195 = scmp.lt.s32.totalorder %s18, 1
        %s196 = scalar_select %p195, %s18, 1
        %s197 = smul.addr %s196, 54
        %s198 = smul.addr %s197, 4
        %s199 = scalar_lea.vmem %s0, %s198
      $region36: #{tpu_custom_call.1} parent=31 // pred_fallthru
        _
    $region32: #{tpu_custom_call.1} parent=5 // pred_fallthru
      _
    %p200 = scmp.le.s32.totalorder 1, %s11
    %p201 = scmp.lt.s32.totalorder %s11, 5
    %p202 = pnand %p200, %p201
    %p203 = pneg %p202
    // Predicated region
    $region37: #{tpu_custom_call.1} parent=5 // pred_check
      _
    $region38: #{tpu_custom_call.1} parent=5 // pred_check_branch
      %205 = sbr.rel (%p202) target = $region40
    $region39: #{tpu_custom_call.1} parent=5 // pred_region
      %s206 = ssub.s32 %s11, 1
      %p207 = scmp.lt.s32.totalorder %s20, 1
      %s208 = scalar_select %p207, %s20, 1
      %s209 = smul.addr %s208, 54
      %s210 = smul.addr %s209, 4
      %s211 = scalar_lea.vmem %s0, %s210
      %p212 = pneg %p49
      %p213 = pneg %p46
      %p214 = pneg %p70
      %p215 = pneg %p67
      %p216 = pneg %p91
      %p217 = pneg %p88
      %p218 = pneg %p112
      %p219 = pneg %p109
      %p220 = pneg %p133
      %p221 = pneg %p130
      %p222 = pneg %p161
      %p223 = pneg %p158
      %s224 = smul.u32 16, %s21
      %p225 = scmp.lt.s32.totalorder %s20, 1
      %s226 = scalar_select %p225, %s20, 1
      %p227 = scmp.lt.s32.totalorder %s224, 31
      %s228 = scalar_select %p227, %s224, 31
      %s229 = smul.addr %s226, 32
      %s230 = sadd.s32 %s228, %s229
      %s231 = smul.addr %s230, 8
      %s232 = scalar_lea.vmem %s5, %s231
      %p233 = scmp.lt.s32.totalorder %s20, 1
      %s234 = scalar_select %p233, %s20, 1
      %s235 = smul.addr %s234, 54
      %s236 = smul.addr %s235, 4
      %s237 = scalar_lea.vmem %s0, %s236
      %s238 = smul.u32 16, %s21
      %p239 = scmp.lt.s32.totalorder %s20, 1
      %s240 = scalar_select %p239, %s20, 1
      %p241 = scmp.lt.s32.totalorder %s238, 31
      %s242 = scalar_select %p241, %s238, 31
      %s243 = smul.addr %s240, 32
      %s244 = sadd.s32 %s242, %s243
      %s245 = smul.addr %s244, 8
      %s246 = scalar_lea.vmem %s5, %s245
      %s247 = smul.u32 16, %s21
      %s249 = smul.u32 %s21, 8
      %s250 = smul.u32 %s249, 3
      %s251 = smul.addr %s250, 4
      %s252 = scalar_lea.vmem %s237, %s251
      %v253 = vld [vmem:[%s252] sm:$0xf]
      %v254 = vld [vmem:[%s252 + $0x4] sm:$0xf]
      %v255 = vld [vmem:[%s252 + $0x8] sm:$0x1]
      %v256 = vld [vmem:[%s252 + $0xc] sm:$0xf]
      %v257 = vld [vmem:[%s252 + $0x10] sm:$0xf]
      %v258 = vld [vmem:[%s252 + $0x14] sm:$0x1]
      %v259 = vld [vmem:[%s252 + $0x18] sm:$0xf]
      %v260 = vld [vmem:[%s252 + $0x1c] sm:$0xf]
      %v261 = vld [vmem:[%s252 + $0x20] sm:$0x1]
      %v262 = vld [vmem:[%s252 + $0x24] sm:$0xf]
      %v263 = vld [vmem:[%s252 + $0x28] sm:$0xf]
      %v264 = vld [vmem:[%s252 + $0x2c] sm:$0x1]
      %v265 = vld [vmem:[%s252 + $0x30] sm:$0xf]
      %v266 = vld [vmem:[%s252 + $0x34] sm:$0xf]
      %v267 = vld [vmem:[%s252 + $0x38] sm:$0x1]
      %v268 = vld [vmem:[%s252 + $0x3c] sm:$0xf]
      %v269 = vld [vmem:[%s252 + $0x40] sm:$0xf]
      %v270 = vld [vmem:[%s252 + $0x44] sm:$0x1]
      %v271 = vld [vmem:[%s252 + $0x48] sm:$0xf]
      %v272 = vld [vmem:[%s252 + $0x4c] sm:$0xf]
      %v273 = vld [vmem:[%s252 + $0x50] sm:$0x1]
      %v274 = vld [vmem:[%s252 + $0x54] sm:$0xf]
      %v275 = vld [vmem:[%s252 + $0x58] sm:$0xf]
      %v276 = vld [vmem:[%s252 + $0x5c] sm:$0x1]
      %v277 = vld [vmem:[%s252 + $0x60] sm:$0xf]
      %v278 = vld [vmem:[%s252 + $0x64] sm:$0xf]
      %v279 = vld [vmem:[%s252 + $0x68] sm:$0x1]
      %v280 = vld [vmem:[%s252 + $0x6c] sm:$0xf]
      %v281 = vld [vmem:[%s252 + $0x70] sm:$0xf]
      %v282 = vld [vmem:[%s252 + $0x74] sm:$0x1]
      %v283 = vld [vmem:[%s1] sm:$0xf]
      %vm284 = vsmask.f32 3328
      %vm285 = vsmask.f32 7440
      %vm286 = vmor %vm284, %vm285
      %v288 = vshrl.u32 %v253, 16
      %v290 = vrot.slane %v288, 4
      %v291 = vshll.u32 %v253, 16
      %v293 = vrot.slane %v291, 5
      %v294 = vor.u32 %v290, %v293
      %v295 = vrot.slane %v294, 4
      %v297 = vshll.u32 %v254, 16
      %v299 = vrot.slane %v297, 5
      %v300 = vsel %vm286, %v295, %v299
      %v301 = vshrl.u32 %v254, 16
      %v303 = vrot.slane %v301, 4
      %v304 = vor.u32 %v303, %v299
      %v305 = vrot.slane %v304, 4
      %v307 = vshll.u32 %v255, 16
      %v309 = vrot.slane %v307, 5
      %v310 = vsel %vm286, %v305, %v309
      %v312 = vshrl.u32 %v256, 16
      %v314 = vrot.slane %v312, 4
      %v315 = vshll.u32 %v256, 16
      %v317 = vrot.slane %v315, 5
      %v318 = vor.u32 %v314, %v317
      %v319 = vrot.slane %v318, 4
      %v321 = vshll.u32 %v257, 16
      %v323 = vrot.slane %v321, 5
      %v324 = vsel %vm286, %v319, %v323
      %v325 = vshrl.u32 %v257, 16
      %v327 = vrot.slane %v325, 4
      %v328 = vor.u32 %v327, %v323
      %v329 = vrot.slane %v328, 4
      %v331 = vshll.u32 %v258, 16
      %v333 = vrot.slane %v331, 5
      %v334 = vsel %vm286, %v329, %v333
      %v336 = vshrl.u32 %v259, 16
      %v338 = vrot.slane %v336, 4
      %v339 = vshll.u32 %v259, 16
      %v341 = vrot.slane %v339, 5
      %v342 = vor.u32 %v338, %v341
      %v343 = vrot.slane %v342, 4
      %v345 = vshll.u32 %v260, 16
      %v347 = vrot.slane %v345, 5
      %v348 = vsel %vm286, %v343, %v347
      %v349 = vshrl.u32 %v260, 16
      %v351 = vrot.slane %v349, 4
      %v352 = vor.u32 %v351, %v347
      %v353 = vrot.slane %v352, 4
      %v355 = vshll.u32 %v261, 16
      %v357 = vrot.slane %v355, 5
      %v358 = vsel %vm286, %v353, %v357
      %v360 = vshrl.u32 %v262, 16
      %v362 = vrot.slane %v360, 4
      %v363 = vshll.u32 %v262, 16
      %v365 = vrot.slane %v363, 5
      %v366 = vor.u32 %v362, %v365
      %v367 = vrot.slane %v366, 4
      %v369 = vshll.u32 %v263, 16
      %v371 = vrot.slane %v369, 5
      %v372 = vsel %vm286, %v367, %v371
      %v373 = vshrl.u32 %v263, 16
      %v375 = vrot.slane %v373, 4
      %v376 = vor.u32 %v375, %v371
      %v377 = vrot.slane %v376, 4
      %v379 = vshll.u32 %v264, 16
      %v381 = vrot.slane %v379, 5
      %v382 = vsel %vm286, %v377, %v381
      %v384 = vshrl.u32 %v265, 16
      %v386 = vrot.slane %v384, 4
      %v387 = vshll.u32 %v265, 16
      %v389 = vrot.slane %v387, 5
      %v390 = vor.u32 %v386, %v389
      %v391 = vrot.slane %v390, 4
      %v393 = vshll.u32 %v266, 16
      %v395 = vrot.slane %v393, 5
      %v396 = vsel %vm286, %v391, %v395
      %v397 = vshrl.u32 %v266, 16
      %v399 = vrot.slane %v397, 4
      %v400 = vor.u32 %v399, %v395
      %v401 = vrot.slane %v400, 4
      %v403 = vshll.u32 %v267, 16
      %v405 = vrot.slane %v403, 5
      %v406 = vsel %vm286, %v401, %v405
      %v408 = vshrl.u32 %v268, 16
      %v410 = vrot.slane %v408, 4
      %v411 = vshll.u32 %v268, 16
      %v413 = vrot.slane %v411, 5
      %v414 = vor.u32 %v410, %v413
      %v415 = vrot.slane %v414, 4
      %v417 = vshll.u32 %v269, 16
      %v419 = vrot.slane %v417, 5
      %v420 = vsel %vm286, %v415, %v419
      %v421 = vshrl.u32 %v269, 16
      %v423 = vrot.slane %v421, 4
      %v424 = vor.u32 %v423, %v419
      %v425 = vrot.slane %v424, 4
      %v427 = vshll.u32 %v270, 16
      %v429 = vrot.slane %v427, 5
      %v430 = vsel %vm286, %v425, %v429
      %v432 = vshrl.u32 %v271, 16
      %v434 = vrot.slane %v432, 4
      %v435 = vshll.u32 %v271, 16
      %v437 = vrot.slane %v435, 5
      %v438 = vor.u32 %v434, %v437
      %v439 = vrot.slane %v438, 4
      %v441 = vshll.u32 %v272, 16
      %v443 = vrot.slane %v441, 5
      %v444 = vsel %vm286, %v439, %v443
      %v445 = vshrl.u32 %v272, 16
      %v447 = vrot.slane %v445, 4
      %v448 = vor.u32 %v447, %v443
      %v449 = vrot.slane %v448, 4
      %v451 = vshll.u32 %v273, 16
      %v453 = vrot.slane %v451, 5
      %v454 = vsel %vm286, %v449, %v453
      %v456 = vshrl.u32 %v274, 16
      %v458 = vrot.slane %v456, 4
      %v459 = vshll.u32 %v274, 16
      %v461 = vrot.slane %v459, 5
      %v462 = vor.u32 %v458, %v461
      %v463 = vrot.slane %v462, 4
      %v465 = vshll.u32 %v275, 16
      %v467 = vrot.slane %v465, 5
      %v468 = vsel %vm286, %v463, %v467
      %v469 = vshrl.u32 %v275, 16
      %v471 = vrot.slane %v469, 4
      %v472 = vor.u32 %v471, %v467
      %v473 = vrot.slane %v472, 4
      %v475 = vshll.u32 %v276, 16
      %v477 = vrot.slane %v475, 5
      %v478 = vsel %vm286, %v473, %v477
      %s479 = scalar_lea.vmem %s1, 4
      %v480 = vld [vmem:[%s479] sm:$0xf]
      %v481 = vunpack.c.l.b16 %v300
      %v482 = vunpack.c.l.b16 %v310
      %v483 = vunpack.c.l.b16 %v324
      %v484 = vunpack.c.l.b16 %v334
      %v485 = vunpack.c.l.b16 %v348
      %v486 = vunpack.c.l.b16 %v358
      %v487 = vunpack.c.l.b16 %v372
      %v488 = vunpack.c.l.b16 %v382
      %v489 = vunpack.c.l.b16 %v396
      %v490 = vunpack.c.l.b16 %v406
      %v491 = vunpack.c.l.b16 %v420
      %v492 = vunpack.c.l.b16 %v430
      %v493 = vunpack.c.l.b16 %v444
      %v494 = vunpack.c.l.b16 %v454
      %v495 = vunpack.c.l.b16 %v468
      %v496 = vunpack.c.l.b16 %v478
      %v497 = vpack.c.b16 %v482, %v481
      %v498 = vpack.c.b16 %v484, %v483
      %v499 = vpack.c.b16 %v486, %v485
      %v500 = vpack.c.b16 %v488, %v487
      %v501 = vpack.c.b16 %v490, %v489
      %v502 = vpack.c.b16 %v492, %v491
      %v503 = vpack.c.b16 %v494, %v493
      %v504 = vpack.c.b16 %v496, %v495
      %v507 = vunpack.c.l.s4 1983009808
      %v508 = vunpack.c.0.s8 %v507
      %v509 = vlaneseq
      %v510 = vshrl.u32 %v509, 7
      %v511 = vsub.s32 %v508, %v510
      %v512 = vrot.slane %v480, %v511
      %v513 = vcombine.high %v512, %v512
      %vm514 = vcmask 31744
      %v516 = vsel %vm514, %v497, 0
      %v519 = vsel %vm514, %v498, 0
      %v522 = vsel %vm514, %v499, 0
      %v525 = vsel %vm514, %v500, 0
      %v528 = vsel %vm514, %v501, 0
      %v531 = vsel %vm514, %v502, 0
      %v534 = vsel %vm514, %v503, 0
      %v537 = vsel %vm514, %v504, 0
      %vm539 = vcmask 1041408
      %v541 = vsel %vm539, %v512, 0
      %v544 = vsel %vm539, %v513, 0
      %546 = vmatprep.subr.bf16.mxu0 %v544
      %547 = vmatpush1.bf16.msra.mxu0 %v541
      %548 = vmatprep.subr.bf16.mxu0 0
      %549 = vmatpush1.bf16.msra.mxu0 0
      %550 = vmatprep.subr.bf16.mxu0 0
      %551 = vmatpush1.bf16.msra.mxu0 0
      %552 = vmatprep.subr.bf16.mxu0 0
      %553 = vmatpush1.bf16.msra.mxu0 0
      %554 = vmatprep.subr.bf16.mxu0 0
      %555 = vmatpush1.bf16.msra.mxu0 0
      %556 = vmatprep.subr.bf16.mxu0 0
      %557 = vmatpush1.bf16.msra.mxu0 0
      %558 = vmatprep.subr.bf16.mxu0 0
      %559 = vmatpush1.bf16.msra.mxu0 0
      %560 = vmatprep.subr.bf16.mxu0 0
      %561 = vmatpush1.bf16.msra.mxu0 0
      %562 = vmatprep.subr.bf16.mxu0 0
      %563 = vmatpush1.bf16.msra.mxu0 0
      %564 = vmatprep.subr.bf16.mxu0 0
      %565 = vmatpush1.bf16.msra.mxu0 0
      %566 = vmatprep.subr.bf16.mxu0 0
      %567 = vmatpush1.bf16.msra.mxu0 0
      %568 = vmatprep.subr.bf16.mxu0 0
      %569 = vmatpush1.bf16.msra.mxu0 0
      %570 = vmatprep.subr.bf16.mxu0 0
      %571 = vmatpush1.bf16.msra.mxu0 0
      %572 = vmatprep.subr.bf16.mxu0 0
      %573 = vmatpush1.bf16.msra.mxu0 0
      %574 = vmatprep.subr.bf16.mxu0 0
      %575 = vmatpush1.bf16.msra.mxu0 0
      %576 = vmatprep.subr.bf16.mxu0 0
      %577 = vmatpush1.bf16.msra.mxu0 0
      %578 = vmatprep.mubr.bf16.mxu0 0
      %579 = vmatmul.mubr.bf16.gmra.mrb[0].mxu0 %v516
      %v580 = vpop.f32.mrb[0].mxu0
      %v581 = vadd.f32 0.0, %v580
      %v582 = vpop.f32.mrb[0].mxu0
      %v583 = vadd.f32 0.0, %v582
      %v584 = vpop.f32.mrb[0].mxu0
      %v585 = vadd.f32 0.0, %v584
      %v586 = vpop.f32.mrb[0].mxu0
      %v587 = vadd.f32 0.0, %v586
      %588 = vmatprep.mubr.bf16.mxu0 0
      %589 = vmatmul.mubr.bf16.gmra.mrb[0].mxu0 %v519
      %v590 = vpop.f32.mrb[0].mxu0
      %v591 = vadd.f32 0.0, %v590
      %v592 = vpop.f32.mrb[0].mxu0
      %v593 = vadd.f32 0.0, %v592
      %v594 = vpop.f32.mrb[0].mxu0
      %v595 = vadd.f32 0.0, %v594
      %v596 = vpop.f32.mrb[0].mxu0
      %v597 = vadd.f32 0.0, %v596
      %598 = vmatprep.mubr.bf16.mxu0 0
      %599 = vmatmul.mubr.bf16.gmra.mrb[0].mxu0 %v522
      %v600 = vpop.f32.mrb[0].mxu0
      %v601 = vadd.f32 0.0, %v600
      %v602 = vpop.f32.mrb[0].mxu0
      %v603 = vadd.f32 0.0, %v602
      %v604 = vpop.f32.mrb[0].mxu0
      %v605 = vadd.f32 0.0, %v604
      %v606 = vpop.f32.mrb[0].mxu0
      %v607 = vadd.f32 0.0, %v606
      %608 = vmatprep.mubr.bf16.mxu0 0
      %609 = vmatmul.mubr.bf16.gmra.mrb[0].mxu0 %v525
      %v610 = vpop.f32.mrb[0].mxu0
      %v611 = vadd.f32 0.0, %v610
      %v612 = vpop.f32.mrb[0].mxu0
      %v613 = vadd.f32 0.0, %v612
      %v614 = vpop.f32.mrb[0].mxu0
      %v615 = vadd.f32 0.0, %v614
      %v616 = vpop.f32.mrb[0].mxu0
      %v617 = vadd.f32 0.0, %v616
      %618 = vmatprep.mubr.bf16.mxu0 0
      %619 = vmatmul.mubr.bf16.gmra.mrb[0].mxu0 %v528
      %v620 = vpop.f32.mrb[0].mxu0
      %v621 = vadd.f32 0.0, %v620
      %v622 = vpop.f32.mrb[0].mxu0
      %v623 = vadd.f32 0.0, %v622
      %v624 = vpop.f32.mrb[0].mxu0
      %v625 = vadd.f32 0.0, %v624
      %v626 = vpop.f32.mrb[0].mxu0
      %v627 = vadd.f32 0.0, %v626
      %628 = vmatprep.mubr.bf16.mxu0 0
      %629 = vmatmul.mubr.bf16.gmra.mrb[0].mxu0 %v531
      %v630 = vpop.f32.mrb[0].mxu0
      %v631 = vadd.f32 0.0, %v630
      %v632 = vpop.f32.mrb[0].mxu0
      %v633 = vadd.f32 0.0, %v632
      %v634 = vpop.f32.mrb[0].mxu0
      %v635 = vadd.f32 0.0, %v634
      %v636 = vpop.f32.mrb[0].mxu0
      %v637 = vadd.f32 0.0, %v636
      %638 = vmatprep.mubr.bf16.mxu0 0
      %639 = vmatmul.mubr.bf16.gmra.mrb[0].mxu0 %v534
      %v640 = vpop.f32.mrb[0].mxu0
      %v641 = vadd.f32 0.0, %v640
      %v642 = vpop.f32.mrb[0].mxu0
      %v643 = vadd.f32 0.0, %v642
      %v644 = vpop.f32.mrb[0].mxu0
      %v645 = vadd.f32 0.0, %v644
      %v646 = vpop.f32.mrb[0].mxu0
      %v647 = vadd.f32 0.0, %v646
      %648 = vmatprep.mubr.bf16.mxu0 0
      %649 = vmatmul.mubr.bf16.gmra.mrb[0].mxu0 %v537
      %v650 = vpop.f32.mrb[0].mxu0
      %v651 = vadd.f32 0.0, %v650
      %v652 = vpop.f32.mrb[0].mxu0
      %v653 = vadd.f32 0.0, %v652
      %v654 = vpop.f32.mrb[0].mxu0
      %v655 = vadd.f32 0.0, %v654
      %v656 = vpop.f32.mrb[0].mxu0
      %v657 = vadd.f32 0.0, %v656
      %658 = vdwg.mxu0
      %v675 = vunpack.c.l.b16 %v253
      %v676 = vunpack.c.l.b16 %v254
      %v677 = vunpack.c.l.b16 %v256
      %v678 = vunpack.c.l.b16 %v257
      %v679 = vunpack.c.l.b16 %v259
      %v680 = vunpack.c.l.b16 %v260
      %v681 = vunpack.c.l.b16 %v262
      %v682 = vunpack.c.l.b16 %v263
      %v683 = vunpack.c.l.b16 %v265
      %v684 = vunpack.c.l.b16 %v266
      %v685 = vunpack.c.l.b16 %v268
      %v686 = vunpack.c.l.b16 %v269
      %v687 = vunpack.c.l.b16 %v271
      %v688 = vunpack.c.l.b16 %v272
      %v689 = vunpack.c.l.b16 %v274
      %v690 = vunpack.c.l.b16 %v275
      %v691 = vpack.c.b16 %v676, %v675
      %v692 = vpack.c.b16 %v678, %v677
      %v693 = vpack.c.b16 %v680, %v679
      %v694 = vpack.c.b16 %v682, %v681
      %v695 = vpack.c.b16 %v684, %v683
      %v696 = vpack.c.b16 %v686, %v685
      %v697 = vpack.c.b16 %v688, %v687
      %v698 = vpack.c.b16 %v690, %v689
      %v701 = vunpack.c.l.s4 1983009808
      %v702 = vunpack.c.0.s8 %v701
      %v703 = vlaneseq
      %v704 = vshrl.u32 %v703, 7
      %v705 = vsub.s32 %v702, %v704
      %v706 = vrot.slane %v283, %v705
      %v707 = vcombine.high %v706, %v706
      %v709 = vsel %vm514, %v691, 0
      %v712 = vsel %vm514, %v692, 0
      %v715 = vsel %vm514, %v693, 0
      %v718 = vsel %vm514, %v694, 0
      %v721 = vsel %vm514, %v695, 0
      %v724 = vsel %vm514, %v696, 0
      %v727 = vsel %vm514, %v697, 0
      %v730 = vsel %vm514, %v698, 0
      %v733 = vsel %vm539, %v706, 0
      %v736 = vsel %vm539, %v707, 0
      %738 = vmatprep.subr.bf16.mxu0 %v736
      %739 = vmatpush1.bf16.msra.mxu0 %v733
      %740 = vmatprep.subr.bf16.mxu0 0
      %741 = vmatpush1.bf16.msra.mxu0 0
      %742 = vmatprep.subr.bf16.mxu0 0
      %743 = vmatpush1.bf16.msra.mxu0 0
      %744 = vmatprep.subr.bf16.mxu0 0
      %745 = vmatpush1.bf16.msra.mxu0 0
      %746 = vmatprep.subr.bf16.mxu0 0
      %747 = vmatpush1.bf16.msra.mxu0 0
      %748 = vmatprep.subr.bf16.mxu0 0
      %749 = vmatpush1.bf16.msra.mxu0 0
      %750 = vmatprep.subr.bf16.mxu0 0
      %751 = vmatpush1.bf16.msra.mxu0 0
      %752 = vmatprep.subr.bf16.mxu0 0
      %753 = vmatpush1.bf16.msra.mxu0 0
      %754 = vmatprep.subr.bf16.mxu0 0
      %755 = vmatpush1.bf16.msra.mxu0 0
      %756 = vmatprep.subr.bf16.mxu0 0
      %757 = vmatpush1.bf16.msra.mxu0 0
      %758 = vmatprep.subr.bf16.mxu0 0
      %759 = vmatpush1.bf16.msra.mxu0 0
      %760 = vmatprep.subr.bf16.mxu0 0
      %761 = vmatpush1.bf16.msra.mxu0 0
      %762 = vmatprep.subr.bf16.mxu0 0
      %763 = vmatpush1.bf16.msra.mxu0 0
      %764 = vmatprep.subr.bf16.mxu0 0
      %765 = vmatpush1.bf16.msra.mxu0 0
      %766 = vmatprep.subr.bf16.mxu0 0
      %767 = vmatpush1.bf16.msra.mxu0 0
      %768 = vmatprep.subr.bf16.mxu0 0
      %769 = vmatpush1.bf16.msra.mxu0 0
      %770 = vmatprep.mubr.bf16.mxu0 0
      %771 = vmatmul.mubr.bf16.gmra.mrb[0].mxu0 %v709
      %v772 = vpop.f32.mrb[0].mxu0
      %v773 = vadd.f32 %v581, %v772
      %v774 = vpop.f32.mrb[0].mxu0
      %v775 = vadd.f32 %v583, %v774
      %v776 = vpop.f32.mrb[0].mxu0
      %v777 = vadd.f32 %v585, %v776
      %v778 = vpop.f32.mrb[0].mxu0
      %v779 = vadd.f32 %v587, %v778
      %780 = vmatprep.mubr.bf16.mxu0 0
      %781 = vmatmul.mubr.bf16.gmra.mrb[0].mxu0 %v712
      %v782 = vpop.f32.mrb[0].mxu0
      %v783 = vadd.f32 %v591, %v782
      %v784 = vpop.f32.mrb[0].mxu0
      %v785 = vadd.f32 %v593, %v784
      %v786 = vpop.f32.mrb[0].mxu0
      %v787 = vadd.f32 %v595, %v786
      %v788 = vpop.f32.mrb[0].mxu0
      %v789 = vadd.f32 %v597, %v788
      %790 = vmatprep.mubr.bf16.mxu0 0
      %791 = vmatmul.mubr.bf16.gmra.mrb[0].mxu0 %v715
      %v792 = vpop.f32.mrb[0].mxu0
      %v793 = vadd.f32 %v601, %v792
      %v794 = vpop.f32.mrb[0].mxu0
      %v795 = vadd.f32 %v603, %v794
      %v796 = vpop.f32.mrb[0].mxu0
      %v797 = vadd.f32 %v605, %v796
      %v798 = vpop.f32.mrb[0].mxu0
      %v799 = vadd.f32 %v607, %v798
      %800 = vmatprep.mubr.bf16.mxu0 0
      %801 = vmatmul.mubr.bf16.gmra.mrb[0].mxu0 %v718
      %v802 = vpop.f32.mrb[0].mxu0
      %v803 = vadd.f32 %v611, %v802
      %v804 = vpop.f32.mrb[0].mxu0
      %v805 = vadd.f32 %v613, %v804
      %v806 = vpop.f32.mrb[0].mxu0
      %v807 = vadd.f32 %v615, %v806
      %v808 = vpop.f32.mrb[0].mxu0
      %v809 = vadd.f32 %v617, %v808
      %810 = vmatprep.mubr.bf16.mxu0 0
      %811 = vmatmul.mubr.bf16.gmra.mrb[0].mxu0 %v721
      %v812 = vpop.f32.mrb[0].mxu0
      %v813 = vadd.f32 %v621, %v812
      %v814 = vpop.f32.mrb[0].mxu0
      %v815 = vadd.f32 %v623, %v814
      %v816 = vpop.f32.mrb[0].mxu0
      %v817 = vadd.f32 %v625, %v816
      %v818 = vpop.f32.mrb[0].mxu0
      %v819 = vadd.f32 %v627, %v818
      %820 = vmatprep.mubr.bf16.mxu0 0
      %821 = vmatmul.mubr.bf16.gmra.mrb[0].mxu0 %v724
      %v822 = vpop.f32.mrb[0].mxu0
      %v823 = vadd.f32 %v631, %v822
      %v824 = vpop.f32.mrb[0].mxu0
      %v825 = vadd.f32 %v633, %v824
      %v826 = vpop.f32.mrb[0].mxu0
      %v827 = vadd.f32 %v635, %v826
      %v828 = vpop.f32.mrb[0].mxu0
      %v829 = vadd.f32 %v637, %v828
      %830 = vmatprep.mubr.bf16.mxu0 0
      %831 = vmatmul.mubr.bf16.gmra.mrb[0].mxu0 %v727
      %v832 = vpop.f32.mrb[0].mxu0
      %v833 = vadd.f32 %v641, %v832
      %v834 = vpop.f32.mrb[0].mxu0
      %v835 = vadd.f32 %v643, %v834
      %v836 = vpop.f32.mrb[0].mxu0
      %v837 = vadd.f32 %v645, %v836
      %v838 = vpop.f32.mrb[0].mxu0
      %v839 = vadd.f32 %v647, %v838
      %840 = vmatprep.mubr.bf16.mxu0 0
      %841 = vmatmul.mubr.bf16.gmra.mrb[0].mxu0 %v730
      %v842 = vpop.f32.mrb[0].mxu0
      %v843 = vadd.f32 %v651, %v842
      %v844 = vpop.f32.mrb[0].mxu0
      %v845 = vadd.f32 %v653, %v844
      %v846 = vpop.f32.mrb[0].mxu0
      %v847 = vadd.f32 %v655, %v846
      %v848 = vpop.f32.mrb[0].mxu0
      %v849 = vadd.f32 %v657, %v848
      %850 = vdwg.mxu0
      %vm859 = vcmask 1042432
      %vm860 = vcmask 1046532
      %vm861 = vmor %vm859, %vm860
      %v862 = vrot.slane %v253, 5
      %v863 = vrot.slane %v862, 4
      %v864 = vrot.slane %v254, 5
      %v865 = vsel %vm861, %v863, %v864
      %v866 = vrot.slane %v864, 4
      %v867 = vrot.slane %v255, 5
      %v868 = vsel %vm861, %v866, %v867
      %v869 = vrot.slane %v256, 5
      %v870 = vrot.slane %v869, 4
      %v871 = vrot.slane %v257, 5
      %v872 = vsel %vm861, %v870, %v871
      %v873 = vrot.slane %v871, 4
      %v874 = vrot.slane %v258, 5
      %v875 = vsel %vm861, %v873, %v874
      %v876 = vrot.slane %v259, 5
      %v877 = vrot.slane %v876, 4
      %v878 = vrot.slane %v260, 5
      %v879 = vsel %vm861, %v877, %v878
      %v880 = vrot.slane %v878, 4
      %v881 = vrot.slane %v261, 5
      %v882 = vsel %vm861, %v880, %v881
      %v883 = vrot.slane %v262, 5
      %v884 = vrot.slane %v883, 4
      %v885 = vrot.slane %v263, 5
      %v886 = vsel %vm861, %v884, %v885
      %v887 = vrot.slane %v885, 4
      %v888 = vrot.slane %v264, 5
      %v889 = vsel %vm861, %v887, %v888
      %v890 = vrot.slane %v265, 5
      %v891 = vrot.slane %v890, 4
      %v892 = vrot.slane %v266, 5
      %v893 = vsel %vm861, %v891, %v892
      %v894 = vrot.slane %v892, 4
      %v895 = vrot.slane %v267, 5
      %v896 = vsel %vm861, %v894, %v895
      %v897 = vrot.slane %v268, 5
      %v898 = vrot.slane %v897, 4
      %v899 = vrot.slane %v269, 5
      %v900 = vsel %vm861, %v898, %v899
      %v901 = vrot.slane %v899, 4
      %v902 = vrot.slane %v270, 5
      %v903 = vsel %vm861, %v901, %v902
      %v904 = vrot.slane %v271, 5
      %v905 = vrot.slane %v904, 4
      %v906 = vrot.slane %v272, 5
      %v907 = vsel %vm861, %v905, %v906
      %v908 = vrot.slane %v906, 4
      %v909 = vrot.slane %v273, 5
      %v910 = vsel %vm861, %v908, %v909
      %v911 = vrot.slane %v274, 5
      %v912 = vrot.slane %v911, 4
      %v913 = vrot.slane %v275, 5
      %v914 = vsel %vm861, %v912, %v913
      %v915 = vrot.slane %v913, 4
      %v916 = vrot.slane %v276, 5
      %v917 = vsel %vm861, %v915, %v916
      %s918 = scalar_lea.vmem %s1, 8
      %v919 = vld [vmem:[%s918] sm:$0xf]
      %v920 = vunpack.c.l.b16 %v865
      %v921 = vunpack.c.l.b16 %v868
      %v922 = vunpack.c.l.b16 %v872
      %v923 = vunpack.c.l.b16 %v875
      %v924 = vunpack.c.l.b16 %v879
      %v925 = vunpack.c.l.b16 %v882
      %v926 = vunpack.c.l.b16 %v886
      %v927 = vunpack.c.l.b16 %v889
      %v928 = vunpack.c.l.b16 %v893
      %v929 = vunpack.c.l.b16 %v896
      %v930 = vunpack.c.l.b16 %v900
      %v931 = vunpack.c.l.b16 %v903
      %v932 = vunpack.c.l.b16 %v907
      %v933 = vunpack.c.l.b16 %v910
      %v934 = vunpack.c.l.b16 %v914
      %v935 = vunpack.c.l.b16 %v917
      %v936 = vpack.c.b16 %v921, %v920
      %v937 = vpack.c.b16 %v923, %v922
      %v938 = vpack.c.b16 %v925, %v924
      %v939 = vpack.c.b16 %v927, %v926
      %v940 = vpack.c.b16 %v929, %v928
      %v941 = vpack.c.b16 %v931, %v930
      %v942 = vpack.c.b16 %v933, %v932
      %v943 = vpack.c.b16 %v935, %v934
      %v946 = vunpack.c.l.s4 1983009808
      %v947 = vunpack.c.0.s8 %v946
      %v948 = vlaneseq
      %v949 = vshrl.u32 %v948, 7
      %v950 = vsub.s32 %v947, %v949
      %v951 = vrot.slane %v919, %v950
      %v952 = vcombine.high %v951, %v951
      %v954 = vsel %vm514, %v936, 0
      %v957 = vsel %vm514, %v937, 0
      %v960 = vsel %vm514, %v938, 0
      %v963 = vsel %vm514, %v939, 0
      %v966 = vsel %vm514, %v940, 0
      %v969 = vsel %vm514, %v941, 0
      %v972 = vsel %vm514, %v942, 0
      %v975 = vsel %vm514, %v943, 0
      %v978 = vsel %vm539, %v951, 0
      %v981 = vsel %vm539, %v952, 0
      %983 = vmatprep.subr.bf16.mxu0 %v981
      %984 = vmatpush1.bf16.msra.mxu0 %v978
      %985 = vmatprep.subr.bf16.mxu0 0
      %986 = vmatpush1.bf16.msra.mxu0 0
      %987 = vmatprep.subr.bf16.mxu0 0
      %988 = vmatpush1.bf16.msra.mxu0 0
      %989 = vmatprep.subr.bf16.mxu0 0
      %990 = vmatpush1.bf16.msra.mxu0 0
      %991 = vmatprep.subr.bf16.mxu0 0
      %992 = vmatpush1.bf16.msra.mxu0 0
      %993 = vmatprep.subr.bf16.mxu0 0
      %994 = vmatpush1.bf16.msra.mxu0 0
      %995 = vmatprep.subr.bf16.mxu0 0
      %996 = vmatpush1.bf16.msra.mxu0 0
      %997 = vmatprep.subr.bf16.mxu0 0
      %998 = vmatpush1.bf16.msra.mxu0 0
      %999 = vmatprep.subr.bf16.mxu0 0
      %1000 = vmatpush1.bf16.msra.mxu0 0
      %1001 = vmatprep.subr.bf16.mxu0 0
      %1002 = vmatpush1.bf16.msra.mxu0 0
      %1003 = vmatprep.subr.bf16.mxu0 0
      %1004 = vmatpush1.bf16.msra.mxu0 0
      %1005 = vmatprep.subr.bf16.mxu0 0
      %1006 = vmatpush1.bf16.msra.mxu0 0
      %1007 = vmatprep.subr.bf16.mxu0 0
      %1008 = vmatpush1.bf16.msra.mxu0 0
      %1009 = vmatprep.subr.bf16.mxu0 0
      %1010 = vmatpush1.bf16.msra.mxu0 0
      %1011 = vmatprep.subr.bf16.mxu0 0
      %1012 = vmatpush1.bf16.msra.mxu0 0
      %1013 = vmatprep.subr.bf16.mxu0 0
      %1014 = vmatpush1.bf16.msra.mxu0 0
      %1015 = vmatprep.mubr.bf16.mxu0 0
      %1016 = vmatmul.mubr.bf16.gmra.mrb[0].mxu0 %v954
      %v1017 = vpop.f32.mrb[0].mxu0
      %v1018 = vadd.f32 0.0, %v1017
      %v1019 = vpop.f32.mrb[0].mxu0
      %v1020 = vadd.f32 0.0, %v1019
      %v1021 = vpop.f32.mrb[0].mxu0
      %v1022 = vadd.f32 0.0, %v1021
      %v1023 = vpop.f32.mrb[0].mxu0
      %v1024 = vadd.f32 0.0, %v1023
      %1025 = vmatprep.mubr.bf16.mxu0 0
      %1026 = vmatmul.mubr.bf16.gmra.mrb[0].mxu0 %v957
      %v1027 = vpop.f32.mrb[0].mxu0
      %v1028 = vadd.f32 0.0, %v1027
      %v1029 = vpop.f32.mrb[0].mxu0
      %v1030 = vadd.f32 0.0, %v1029
      %v1031 = vpop.f32.mrb[0].mxu0
      %v1032 = vadd.f32 0.0, %v1031
      %v1033 = vpop.f32.mrb[0].mxu0
      %v1034 = vadd.f32 0.0, %v1033
      %1035 = vmatprep.mubr.bf16.mxu0 0
      %1036 = vmatmul.mubr.bf16.gmra.mrb[0].mxu0 %v960
      %v1037 = vpop.f32.mrb[0].mxu0
      %v1038 = vadd.f32 0.0, %v1037
      %v1039 = vpop.f32.mrb[0].mxu0
      %v1040 = vadd.f32 0.0, %v1039
      %v1041 = vpop.f32.mrb[0].mxu0
      %v1042 = vadd.f32 0.0, %v1041
      %v1043 = vpop.f32.mrb[0].mxu0
      %v1044 = vadd.f32 0.0, %v1043
      %1045 = vmatprep.mubr.bf16.mxu0 0
      %1046 = vmatmul.mubr.bf16.gmra.mrb[0].mxu0 %v963
      %v1047 = vpop.f32.mrb[0].mxu0
      %v1048 = vadd.f32 0.0, %v1047
      %v1049 = vpop.f32.mrb[0].mxu0
      %v1050 = vadd.f32 0.0, %v1049
      %v1051 = vpop.f32.mrb[0].mxu0
      %v1052 = vadd.f32 0.0, %v1051
      %v1053 = vpop.f32.mrb[0].mxu0
      %v1054 = vadd.f32 0.0, %v1053
      %1055 = vmatprep.mubr.bf16.mxu0 0
      %1056 = vmatmul.mubr.bf16.gmra.mrb[0].mxu0 %v966
      %v1057 = vpop.f32.mrb[0].mxu0
      %v1058 = vadd.f32 0.0, %v1057
      %v1059 = vpop.f32.mrb[0].mxu0
      %v1060 = vadd.f32 0.0, %v1059
      %v1061 = vpop.f32.mrb[0].mxu0
      %v1062 = vadd.f32 0.0, %v1061
      %v1063 = vpop.f32.mrb[0].mxu0
      %v1064 = vadd.f32 0.0, %v1063
      %1065 = vmatprep.mubr.bf16.mxu0 0
      %1066 = vmatmul.mubr.bf16.gmra.mrb[0].mxu0 %v969
      %v1067 = vpop.f32.mrb[0].mxu0
      %v1068 = vadd.f32 0.0, %v1067
      %v1069 = vpop.f32.mrb[0].mxu0
      %v1070 = vadd.f32 0.0, %v1069
      %v1071 = vpop.f32.mrb[0].mxu0
      %v1072 = vadd.f32 0.0, %v1071
      %v1073 = vpop.f32.mrb[0].mxu0
      %v1074 = vadd.f32 0.0, %v1073
      %1075 = vmatprep.mubr.bf16.mxu0 0
      %1076 = vmatmul.mubr.bf16.gmra.mrb[0].mxu0 %v972
      %v1077 = vpop.f32.mrb[0].mxu0
      %v1078 = vadd.f32 0.0, %v1077
      %v1079 = vpop.f32.mrb[0].mxu0
      %v1080 = vadd.f32 0.0, %v1079
      %v1081 = vpop.f32.mrb[0].mxu0
      %v1082 = vadd.f32 0.0, %v1081
      %v1083 = vpop.f32.mrb[0].mxu0
      %v1084 = vadd.f32 0.0, %v1083
      %1085 = vmatprep.mubr.bf16.mxu0 0
      %1086 = vmatmul.mubr.bf16.gmra.mrb[0].mxu0 %v975
      %v1087 = vpop.f32.mrb[0].mxu0
      %v1088 = vadd.f32 0.0, %v1087
      %v1089 = vpop.f32.mrb[0].mxu0
      %v1090 = vadd.f32 0.0, %v1089
      %v1091 = vpop.f32.mrb[0].mxu0
      %v1092 = vadd.f32 0.0, %v1091
      %v1093 = vpop.f32.mrb[0].mxu0
      %v1094 = vadd.f32 0.0, %v1093
      %1095 = vdwg.mxu0
      %v1096 = vadd.f32 %v773, %v1018
      %v1097 = vadd.f32 %v775, %v1020
      %v1098 = vadd.f32 %v777, %v1022
      %v1099 = vadd.f32 %v779, %v1024
      %v1100 = vadd.f32 %v783, %v1028
      %v1101 = vadd.f32 %v785, %v1030
      %v1102 = vadd.f32 %v787, %v1032
      %v1103 = vadd.f32 %v789, %v1034
      %v1104 = vadd.f32 %v793, %v1038
      %v1105 = vadd.f32 %v795, %v1040
      %v1106 = vadd.f32 %v797, %v1042
      %v1107 = vadd.f32 %v799, %v1044
      %v1108 = vadd.f32 %v803, %v1048
      %v1109 = vadd.f32 %v805, %v1050
      %v1110 = vadd.f32 %v807, %v1052
      %v1111 = vadd.f32 %v809, %v1054
      %v1112 = vadd.f32 %v813, %v1058
      %v1113 = vadd.f32 %v815, %v1060
      %v1114 = vadd.f32 %v817, %v1062
      %v1115 = vadd.f32 %v819, %v1064
      %v1116 = vadd.f32 %v823, %v1068
      %v1117 = vadd.f32 %v825, %v1070
      %v1118 = vadd.f32 %v827, %v1072
      %v1119 = vadd.f32 %v829, %v1074
      %v1120 = vadd.f32 %v833, %v1078
      %v1121 = vadd.f32 %v835, %v1080
      %v1122 = vadd.f32 %v837, %v1082
      %v1123 = vadd.f32 %v839, %v1084
      %v1124 = vadd.f32 %v843, %v1088
      %v1125 = vadd.f32 %v845, %v1090
      %v1126 = vadd.f32 %v847, %v1092
      %v1127 = vadd.f32 %v849, %v1094
      %s1128 = scalar_lea.vmem %s1, 12
      %v1129 = vld [vmem:[%s1128] sm:$0xf]
      %v1132 = vunpack.c.l.b16 %v277
      %v1133 = vunpack.c.l.b16 %v278
      %v1134 = vpack.c.b16 %v1133, %v1132
      %v1137 = vunpack.c.l.s4 1983009808
      %v1138 = vunpack.c.0.s8 %v1137
      %v1139 = vlaneseq
      %v1140 = vshrl.u32 %v1139, 7
      %v1141 = vsub.s32 %v1138, %v1140
      %v1142 = vrot.slane %v1129, %v1141
      %v1143 = vcombine.high %v1142, %v1142
      %v1145 = vsel %vm514, %v1134, 0
      %v1148 = vsel %vm539, %v1142, 0
      %v1151 = vsel %vm539, %v1143, 0
      %1153 = vmatprep.subr.bf16.mxu0 %v1151
      %1154 = vmatpush1.bf16.msra.mxu0 %v1148
      %1155 = vmatprep.subr.bf16.mxu0 0
      %1156 = vmatpush1.bf16.msra.mxu0 0
      %1157 = vmatprep.subr.bf16.mxu0 0
      %1158 = vmatpush1.bf16.msra.mxu0 0
      %1159 = vmatprep.subr.bf16.mxu0 0
      %1160 = vmatpush1.bf16.msra.mxu0 0
      %1161 = vmatprep.subr.bf16.mxu0 0
      %1162 = vmatpush1.bf16.msra.mxu0 0
      %1163 = vmatprep.subr.bf16.mxu0 0
      %1164 = vmatpush1.bf16.msra.mxu0 0
      %1165 = vmatprep.subr.bf16.mxu0 0
      %1166 = vmatpush1.bf16.msra.mxu0 0
      %1167 = vmatprep.subr.bf16.mxu0 0
      %1168 = vmatpush1.bf16.msra.mxu0 0
      %1169 = vmatprep.subr.bf16.mxu0 0
      %1170 = vmatpush1.bf16.msra.mxu0 0
      %1171 = vmatprep.subr.bf16.mxu0 0
      %1172 = vmatpush1.bf16.msra.mxu0 0
      %1173 = vmatprep.subr.bf16.mxu0 0
      %1174 = vmatpush1.bf16.msra.mxu0 0
      %1175 = vmatprep.subr.bf16.mxu0 0
      %1176 = vmatpush1.bf16.msra.mxu0 0
      %1177 = vmatprep.subr.bf16.mxu0 0
      %1178 = vmatpush1.bf16.msra.mxu0 0
      %1179 = vmatprep.subr.bf16.mxu0 0
      %1180 = vmatpush1.bf16.msra.mxu0 0
      %1181 = vmatprep.subr.bf16.mxu0 0
      %1182 = vmatpush1.bf16.msra.mxu0 0
      %1183 = vmatprep.subr.bf16.mxu0 0
      %1184 = vmatpush1.bf16.msra.mxu0 0
      %1185 = vmatprep.mubr.bf16.mxu0 0
      %1186 = vmatmul.mubr.bf16.gmra.mrb[0].mxu0 %v712
      %v1187 = vpop.f32.mrb[0].mxu0
      %v1188 = vadd.f32 0.0, %v1187
      %v1189 = vpop.f32.mrb[0].mxu0
      %v1190 = vadd.f32 0.0, %v1189
      %v1191 = vpop.f32.mrb[0].mxu0
      %v1192 = vadd.f32 0.0, %v1191
      %v1193 = vpop.f32.mrb[0].mxu0
      %v1194 = vadd.f32 0.0, %v1193
      %1195 = vmatprep.mubr.bf16.mxu0 0
      %1196 = vmatmul.mubr.bf16.gmra.mrb[0].mxu0 %v715
      %v1197 = vpop.f32.mrb[0].mxu0
      %v1198 = vadd.f32 0.0, %v1197
      %v1199 = vpop.f32.mrb[0].mxu0
      %v1200 = vadd.f32 0.0, %v1199
      %v1201 = vpop.f32.mrb[0].mxu0
      %v1202 = vadd.f32 0.0, %v1201
      %v1203 = vpop.f32.mrb[0].mxu0
      %v1204 = vadd.f32 0.0, %v1203
      %1205 = vmatprep.mubr.bf16.mxu0 0
      %1206 = vmatmul.mubr.bf16.gmra.mrb[0].mxu0 %v718
      %v1207 = vpop.f32.mrb[0].mxu0
      %v1208 = vadd.f32 0.0, %v1207
      %v1209 = vpop.f32.mrb[0].mxu0
      %v1210 = vadd.f32 0.0, %v1209
      %v1211 = vpop.f32.mrb[0].mxu0
      %v1212 = vadd.f32 0.0, %v1211
      %v1213 = vpop.f32.mrb[0].mxu0
      %v1214 = vadd.f32 0.0, %v1213
      %1215 = vmatprep.mubr.bf16.mxu0 0
      %1216 = vmatmul.mubr.bf16.gmra.mrb[0].mxu0 %v721
      %v1217 = vpop.f32.mrb[0].mxu0
      %v1218 = vadd.f32 0.0, %v1217
      %v1219 = vpop.f32.mrb[0].mxu0
      %v1220 = vadd.f32 0.0, %v1219
      %v1221 = vpop.f32.mrb[0].mxu0
      %v1222 = vadd.f32 0.0, %v1221
      %v1223 = vpop.f32.mrb[0].mxu0
      %v1224 = vadd.f32 0.0, %v1223
      %1225 = vmatprep.mubr.bf16.mxu0 0
      %1226 = vmatmul.mubr.bf16.gmra.mrb[0].mxu0 %v724
      %v1227 = vpop.f32.mrb[0].mxu0
      %v1228 = vadd.f32 0.0, %v1227
      %v1229 = vpop.f32.mrb[0].mxu0
      %v1230 = vadd.f32 0.0, %v1229
      %v1231 = vpop.f32.mrb[0].mxu0
      %v1232 = vadd.f32 0.0, %v1231
      %v1233 = vpop.f32.mrb[0].mxu0
      %v1234 = vadd.f32 0.0, %v1233
      %1235 = vmatprep.mubr.bf16.mxu0 0
      %1236 = vmatmul.mubr.bf16.gmra.mrb[0].mxu0 %v727
      %v1237 = vpop.f32.mrb[0].mxu0
      %v1238 = vadd.f32 0.0, %v1237
      %v1239 = vpop.f32.mrb[0].mxu0
      %v1240 = vadd.f32 0.0, %v1239
      %v1241 = vpop.f32.mrb[0].mxu0
      %v1242 = vadd.f32 0.0, %v1241
      %v1243 = vpop.f32.mrb[0].mxu0
      %v1244 = vadd.f32 0.0, %v1243
      %1245 = vmatprep.mubr.bf16.mxu0 0
      %1246 = vmatmul.mubr.bf16.gmra.mrb[0].mxu0 %v730
      %v1247 = vpop.f32.mrb[0].mxu0
      %v1248 = vadd.f32 0.0, %v1247
      %v1249 = vpop.f32.mrb[0].mxu0
      %v1250 = vadd.f32 0.0, %v1249
      %v1251 = vpop.f32.mrb[0].mxu0
      %v1252 = vadd.f32 0.0, %v1251
      %v1253 = vpop.f32.mrb[0].mxu0
      %v1254 = vadd.f32 0.0, %v1253
      %1255 = vmatprep.mubr.bf16.mxu0 0
      %1256 = vmatmul.mubr.bf16.gmra.mrb[0].mxu0 %v1145
      %v1257 = vpop.f32.mrb[0].mxu0
      %v1258 = vadd.f32 0.0, %v1257
      %v1259 = vpop.f32.mrb[0].mxu0
      %v1260 = vadd.f32 0.0, %v1259
      %v1261 = vpop.f32.mrb[0].mxu0
      %v1262 = vadd.f32 0.0, %v1261
      %v1263 = vpop.f32.mrb[0].mxu0
      %v1264 = vadd.f32 0.0, %v1263
      %1265 = vdwg.mxu0
      %v1266 = vadd.f32 %v1096, %v1188
      %v1267 = vadd.f32 %v1097, %v1190
      %v1268 = vadd.f32 %v1098, %v1192
      %v1269 = vadd.f32 %v1099, %v1194
      %v1270 = vadd.f32 %v1100, %v1198
      %v1271 = vadd.f32 %v1101, %v1200
      %v1272 = vadd.f32 %v1102, %v1202
      %v1273 = vadd.f32 %v1103, %v1204
      %v1274 = vadd.f32 %v1104, %v1208
      %v1275 = vadd.f32 %v1105, %v1210
      %v1276 = vadd.f32 %v1106, %v1212
      %v1277 = vadd.f32 %v1107, %v1214
      %v1278 = vadd.f32 %v1108, %v1218
      %v1279 = vadd.f32 %v1109, %v1220
      %v1280 = vadd.f32 %v1110, %v1222
      %v1281 = vadd.f32 %v1111, %v1224
      %v1282 = vadd.f32 %v1112, %v1228
      %v1283 = vadd.f32 %v1113, %v1230
      %v1284 = vadd.f32 %v1114, %v1232
      %v1285 = vadd.f32 %v1115, %v1234
      %v1286 = vadd.f32 %v1116, %v1238
      %v1287 = vadd.f32 %v1117, %v1240
      %v1288 = vadd.f32 %v1118, %v1242
      %v1289 = vadd.f32 %v1119, %v1244
      %v1290 = vadd.f32 %v1120, %v1248
      %v1291 = vadd.f32 %v1121, %v1250
      %v1292 = vadd.f32 %v1122, %v1252
      %v1293 = vadd.f32 %v1123, %v1254
      %v1294 = vadd.f32 %v1124, %v1258
      %v1295 = vadd.f32 %v1125, %v1260
      %v1296 = vadd.f32 %v1126, %v1262
      %v1297 = vadd.f32 %v1127, %v1264
      %v1299 = vshrl.u32 %v277, 16
      %v1301 = vrot.slane %v1299, 4
      %v1302 = vshll.u32 %v277, 16
      %v1304 = vrot.slane %v1302, 5
      %v1305 = vor.u32 %v1301, %v1304
      %v1306 = vrot.slane %v1305, 4
      %v1308 = vshll.u32 %v278, 16
      %v1310 = vrot.slane %v1308, 5
      %v1311 = vsel %vm286, %v1306, %v1310
      %v1312 = vshrl.u32 %v278, 16
      %v1314 = vrot.slane %v1312, 4
      %v1315 = vor.u32 %v1314, %v1310
      %v1316 = vrot.slane %v1315, 4
      %v1318 = vshll.u32 %v279, 16
      %v1320 = vrot.slane %v1318, 5
      %v1321 = vsel %vm286, %v1316, %v1320
      %s1322 = scalar_lea.vmem %s1, 16
      %v1323 = vld [vmem:[%s1322] sm:$0xf]
      %v1324 = vunpack.c.l.b16 %v1311
      %v1325 = vunpack.c.l.b16 %v1321
      %v1326 = vpack.c.b16 %v1325, %v1324
      %v1329 = vunpack.c.l.s4 1983009808
      %v1330 = vunpack.c.0.s8 %v1329
      %v1331 = vlaneseq
      %v1332 = vshrl.u32 %v1331, 7
      %v1333 = vsub.s32 %v1330, %v1332
      %v1334 = vrot.slane %v1323, %v1333
      %v1335 = vcombine.high %v1334, %v1334
      %v1337 = vsel %vm514, %v1326, 0
      %v1340 = vsel %vm539, %v1334, 0
      %v1343 = vsel %vm539, %v1335, 0
      %1345 = vmatprep.subr.bf16.mxu0 %v1343
      %1346 = vmatpush1.bf16.msra.mxu0 %v1340
      %1347 = vmatprep.subr.bf16.mxu0 0
      %1348 = vmatpush1.bf16.msra.mxu0 0
      %1349 = vmatprep.subr.bf16.mxu0 0
      %1350 = vmatpush1.bf16.msra.mxu0 0
      %1351 = vmatprep.subr.bf16.mxu0 0
      %1352 = vmatpush1.bf16.msra.mxu0 0
      %1353 = vmatprep.subr.bf16.mxu0 0
      %1354 = vmatpush1.bf16.msra.mxu0 0
      %1355 = vmatprep.subr.bf16.mxu0 0
      %1356 = vmatpush1.bf16.msra.mxu0 0
      %1357 = vmatprep.subr.bf16.mxu0 0
      %1358 = vmatpush1.bf16.msra.mxu0 0
      %1359 = vmatprep.subr.bf16.mxu0 0
      %1360 = vmatpush1.bf16.msra.mxu0 0
      %1361 = vmatprep.subr.bf16.mxu0 0
      %1362 = vmatpush1.bf16.msra.mxu0 0
      %1363 = vmatprep.subr.bf16.mxu0 0
      %1364 = vmatpush1.bf16.msra.mxu0 0
      %1365 = vmatprep.subr.bf16.mxu0 0
      %1366 = vmatpush1.bf16.msra.mxu0 0
      %1367 = vmatprep.subr.bf16.mxu0 0
      %1368 = vmatpush1.bf16.msra.mxu0 0
      %1369 = vmatprep.subr.bf16.mxu0 0
      %1370 = vmatpush1.bf16.msra.mxu0 0
      %1371 = vmatprep.subr.bf16.mxu0 0
      %1372 = vmatpush1.bf16.msra.mxu0 0
      %1373 = vmatprep.subr.bf16.mxu0 0
      %1374 = vmatpush1.bf16.msra.mxu0 0
      %1375 = vmatprep.subr.bf16.mxu0 0
      %1376 = vmatpush1.bf16.msra.mxu0 0
      %1377 = vmatprep.mubr.bf16.mxu0 0
      %1378 = vmatmul.mubr.bf16.gmra.mrb[0].mxu0 %v519
      %v1379 = vpop.f32.mrb[0].mxu0
      %v1380 = vadd.f32 0.0, %v1379
      %v1381 = vpop.f32.mrb[0].mxu0
      %v1382 = vadd.f32 0.0, %v1381
      %v1383 = vpop.f32.mrb[0].mxu0
      %v1384 = vadd.f32 0.0, %v1383
      %v1385 = vpop.f32.mrb[0].mxu0
      %v1386 = vadd.f32 0.0, %v1385
      %1387 = vmatprep.mubr.bf16.mxu0 0
      %1388 = vmatmul.mubr.bf16.gmra.mrb[0].mxu0 %v522
      %v1389 = vpop.f32.mrb[0].mxu0
      %v1390 = vadd.f32 0.0, %v1389
      %v1391 = vpop.f32.mrb[0].mxu0
      %v1392 = vadd.f32 0.0, %v1391
      %v1393 = vpop.f32.mrb[0].mxu0
      %v1394 = vadd.f32 0.0, %v1393
      %v1395 = vpop.f32.mrb[0].mxu0
      %v1396 = vadd.f32 0.0, %v1395
      %1397 = vmatprep.mubr.bf16.mxu0 0
      %1398 = vmatmul.mubr.bf16.gmra.mrb[0].mxu0 %v525
      %v1399 = vpop.f32.mrb[0].mxu0
      %v1400 = vadd.f32 0.0, %v1399
      %v1401 = vpop.f32.mrb[0].mxu0
      %v1402 = vadd.f32 0.0, %v1401
      %v1403 = vpop.f32.mrb[0].mxu0
      %v1404 = vadd.f32 0.0, %v1403
      %v1405 = vpop.f32.mrb[0].mxu0
      %v1406 = vadd.f32 0.0, %v1405
      %1407 = vmatprep.mubr.bf16.mxu0 0
      %1408 = vmatmul.mubr.bf16.gmra.mrb[0].mxu0 %v528
      %v1409 = vpop.f32.mrb[0].mxu0
      %v1410 = vadd.f32 0.0, %v1409
      %v1411 = vpop.f32.mrb[0].mxu0
      %v1412 = vadd.f32 0.0, %v1411
      %v1413 = vpop.f32.mrb[0].mxu0
      %v1414 = vadd.f32 0.0, %v1413
      %v1415 = vpop.f32.mrb[0].mxu0
      %v1416 = vadd.f32 0.0, %v1415
      %1417 = vmatprep.mubr.bf16.mxu0 0
      %1418 = vmatmul.mubr.bf16.gmra.mrb[0].mxu0 %v531
      %v1419 = vpop.f32.mrb[0].mxu0
      %v1420 = vadd.f32 0.0, %v1419
      %v1421 = vpop.f32.mrb[0].mxu0
      %v1422 = vadd.f32 0.0, %v1421
      %v1423 = vpop.f32.mrb[0].mxu0
      %v1424 = vadd.f32 0.0, %v1423
      %v1425 = vpop.f32.mrb[0].mxu0
      %v1426 = vadd.f32 0.0, %v1425
      %1427 = vmatprep.mubr.bf16.mxu0 0
      %1428 = vmatmul.mubr.bf16.gmra.mrb[0].mxu0 %v534
      %v1429 = vpop.f32.mrb[0].mxu0
      %v1430 = vadd.f32 0.0, %v1429
      %v1431 = vpop.f32.mrb[0].mxu0
      %v1432 = vadd.f32 0.0, %v1431
      %v1433 = vpop.f32.mrb[0].mxu0
      %v1434 = vadd.f32 0.0, %v1433
      %v1435 = vpop.f32.mrb[0].mxu0
      %v1436 = vadd.f32 0.0, %v1435
      %1437 = vmatprep.mubr.bf16.mxu0 0
      %1438 = vmatmul.mubr.bf16.gmra.mrb[0].mxu0 %v537
      %v1439 = vpop.f32.mrb[0].mxu0
      %v1440 = vadd.f32 0.0, %v1439
      %v1441 = vpop.f32.mrb[0].mxu0
      %v1442 = vadd.f32 0.0, %v1441
      %v1443 = vpop.f32.mrb[0].mxu0
      %v1444 = vadd.f32 0.0, %v1443
      %v1445 = vpop.f32.mrb[0].mxu0
      %v1446 = vadd.f32 0.0, %v1445
      %1447 = vmatprep.mubr.bf16.mxu0 0
      %1448 = vmatmul.mubr.bf16.gmra.mrb[0].mxu0 %v1337
      %v1449 = vpop.f32.mrb[0].mxu0
      %v1450 = vadd.f32 0.0, %v1449
      %v1451 = vpop.f32.mrb[0].mxu0
      %v1452 = vadd.f32 0.0, %v1451
      %v1453 = vpop.f32.mrb[0].mxu0
      %v1454 = vadd.f32 0.0, %v1453
      %v1455 = vpop.f32.mrb[0].mxu0
      %v1456 = vadd.f32 0.0, %v1455
      %1457 = vdwg.mxu0
      %v1458 = vadd.f32 %v1266, %v1380
      %v1459 = vadd.f32 %v1267, %v1382
      %v1460 = vadd.f32 %v1268, %v1384
      %v1461 = vadd.f32 %v1269, %v1386
      %v1462 = vadd.f32 %v1270, %v1390
      %v1463 = vadd.f32 %v1271, %v1392
      %v1464 = vadd.f32 %v1272, %v1394
      %v1465 = vadd.f32 %v1273, %v1396
      %v1466 = vadd.f32 %v1274, %v1400
      %v1467 = vadd.f32 %v1275, %v1402
      %v1468 = vadd.f32 %v1276, %v1404
      %v1469 = vadd.f32 %v1277, %v1406
      %v1470 = vadd.f32 %v1278, %v1410
      %v1471 = vadd.f32 %v1279, %v1412
      %v1472 = vadd.f32 %v1280, %v1414
      %v1473 = vadd.f32 %v1281, %v1416
      %v1474 = vadd.f32 %v1282, %v1420
      %v1475 = vadd.f32 %v1283, %v1422
      %v1476 = vadd.f32 %v1284, %v1424
      %v1477 = vadd.f32 %v1285, %v1426
      %v1478 = vadd.f32 %v1286, %v1430
      %v1479 = vadd.f32 %v1287, %v1432
      %v1480 = vadd.f32 %v1288, %v1434
      %v1481 = vadd.f32 %v1289, %v1436
      %v1482 = vadd.f32 %v1290, %v1440
      %v1483 = vadd.f32 %v1291, %v1442
      %v1484 = vadd.f32 %v1292, %v1444
      %v1485 = vadd.f32 %v1293, %v1446
      %v1486 = vadd.f32 %v1294, %v1450
      %v1487 = vadd.f32 %v1295, %v1452
      %v1488 = vadd.f32 %v1296, %v1454
      %v1489 = vadd.f32 %v1297, %v1456
      %v1491 = vrot.slane %v277, 5
      %v1492 = vrot.slane %v1491, 4
      %v1493 = vrot.slane %v278, 5
      %v1494 = vsel %vm861, %v1492, %v1493
      %v1495 = vrot.slane %v1493, 4
      %v1496 = vrot.slane %v279, 5
      %v1497 = vsel %vm861, %v1495, %v1496
      %s1498 = scalar_lea.vmem %s1, 20
      %v1499 = vld [vmem:[%s1498] sm:$0xf]
      %v1500 = vunpack.c.l.b16 %v1494
      %v1501 = vunpack.c.l.b16 %v1497
      %v1502 = vpack.c.b16 %v1501, %v1500
      %v1505 = vunpack.c.l.s4 1983009808
      %v1506 = vunpack.c.0.s8 %v1505
      %v1507 = vlaneseq
      %v1508 = vshrl.u32 %v1507, 7
      %v1509 = vsub.s32 %v1506, %v1508
      %v1510 = vrot.slane %v1499, %v1509
      %v1511 = vcombine.high %v1510, %v1510
      %v1513 = vsel %vm514, %v1502, 0
      %v1516 = vsel %vm539, %v1510, 0
      %v1519 = vsel %vm539, %v1511, 0
      %1521 = vmatprep.subr.bf16.mxu0 %v1519
      %1522 = vmatpush1.bf16.msra.mxu0 %v1516
      %1523 = vmatprep.subr.bf16.mxu0 0
      %1524 = vmatpush1.bf16.msra.mxu0 0
      %1525 = vmatprep.subr.bf16.mxu0 0
      %1526 = vmatpush1.bf16.msra.mxu0 0
      %1527 = vmatprep.subr.bf16.mxu0 0
      %1528 = vmatpush1.bf16.msra.mxu0 0
      %1529 = vmatprep.subr.bf16.mxu0 0
      %1530 = vmatpush1.bf16.msra.mxu0 0
      %1531 = vmatprep.subr.bf16.mxu0 0
      %1532 = vmatpush1.bf16.msra.mxu0 0
      %1533 = vmatprep.subr.bf16.mxu0 0
      %1534 = vmatpush1.bf16.msra.mxu0 0
      %1535 = vmatprep.subr.bf16.mxu0 0
      %1536 = vmatpush1.bf16.msra.mxu0 0
      %1537 = vmatprep.subr.bf16.mxu0 0
      %1538 = vmatpush1.bf16.msra.mxu0 0
      %1539 = vmatprep.subr.bf16.mxu0 0
      %1540 = vmatpush1.bf16.msra.mxu0 0
      %1541 = vmatprep.subr.bf16.mxu0 0
      %1542 = vmatpush1.bf16.msra.mxu0 0
      %1543 = vmatprep.subr.bf16.mxu0 0
      %1544 = vmatpush1.bf16.msra.mxu0 0
      %1545 = vmatprep.subr.bf16.mxu0 0
      %1546 = vmatpush1.bf16.msra.mxu0 0
      %1547 = vmatprep.subr.bf16.mxu0 0
      %1548 = vmatpush1.bf16.msra.mxu0 0
      %1549 = vmatprep.subr.bf16.mxu0 0
      %1550 = vmatpush1.bf16.msra.mxu0 0
      %1551 = vmatprep.subr.bf16.mxu0 0
      %1552 = vmatpush1.bf16.msra.mxu0 0
      %1553 = vmatprep.mubr.bf16.mxu0 0
      %1554 = vmatmul.mubr.bf16.gmra.mrb[0].mxu0 %v957
      %v1555 = vpop.f32.mrb[0].mxu0
      %v1556 = vadd.f32 0.0, %v1555
      %v1557 = vpop.f32.mrb[0].mxu0
      %v1558 = vadd.f32 0.0, %v1557
      %v1559 = vpop.f32.mrb[0].mxu0
      %v1560 = vadd.f32 0.0, %v1559
      %v1561 = vpop.f32.mrb[0].mxu0
      %v1562 = vadd.f32 0.0, %v1561
      %1563 = vmatprep.mubr.bf16.mxu0 0
      %1564 = vmatmul.mubr.bf16.gmra.mrb[0].mxu0 %v960
      %v1565 = vpop.f32.mrb[0].mxu0
      %v1566 = vadd.f32 0.0, %v1565
      %v1567 = vpop.f32.mrb[0].mxu0
      %v1568 = vadd.f32 0.0, %v1567
      %v1569 = vpop.f32.mrb[0].mxu0
      %v1570 = vadd.f32 0.0, %v1569
      %v1571 = vpop.f32.mrb[0].mxu0
      %v1572 = vadd.f32 0.0, %v1571
      %1573 = vmatprep.mubr.bf16.mxu0 0
      %1574 = vmatmul.mubr.bf16.gmra.mrb[0].mxu0 %v963
      %v1575 = vpop.f32.mrb[0].mxu0
      %v1576 = vadd.f32 0.0, %v1575
      %v1577 = vpop.f32.mrb[0].mxu0
      %v1578 = vadd.f32 0.0, %v1577
      %v1579 = vpop.f32.mrb[0].mxu0
      %v1580 = vadd.f32 0.0, %v1579
      %v1581 = vpop.f32.mrb[0].mxu0
      %v1582 = vadd.f32 0.0, %v1581
      %1583 = vmatprep.mubr.bf16.mxu0 0
      %1584 = vmatmul.mubr.bf16.gmra.mrb[0].mxu0 %v966
      %v1585 = vpop.f32.mrb[0].mxu0
      %v1586 = vadd.f32 0.0, %v1585
      %v1587 = vpop.f32.mrb[0].mxu0
      %v1588 = vadd.f32 0.0, %v1587
      %v1589 = vpop.f32.mrb[0].mxu0
      %v1590 = vadd.f32 0.0, %v1589
      %v1591 = vpop.f32.mrb[0].mxu0
      %v1592 = vadd.f32 0.0, %v1591
      %1593 = vmatprep.mubr.bf16.mxu0 0
      %1594 = vmatmul.mubr.bf16.gmra.mrb[0].mxu0 %v969
      %v1595 = vpop.f32.mrb[0].mxu0
      %v1596 = vadd.f32 0.0, %v1595
      %v1597 = vpop.f32.mrb[0].mxu0
      %v1598 = vadd.f32 0.0, %v1597
      %v1599 = vpop.f32.mrb[0].mxu0
      %v1600 = vadd.f32 0.0, %v1599
      %v1601 = vpop.f32.mrb[0].mxu0
      %v1602 = vadd.f32 0.0, %v1601
      %1603 = vmatprep.mubr.bf16.mxu0 0
      %1604 = vmatmul.mubr.bf16.gmra.mrb[0].mxu0 %v972
      %v1605 = vpop.f32.mrb[0].mxu0
      %v1606 = vadd.f32 0.0, %v1605
      %v1607 = vpop.f32.mrb[0].mxu0
      %v1608 = vadd.f32 0.0, %v1607
      %v1609 = vpop.f32.mrb[0].mxu0
      %v1610 = vadd.f32 0.0, %v1609
      %v1611 = vpop.f32.mrb[0].mxu0
      %v1612 = vadd.f32 0.0, %v1611
      %1613 = vmatprep.mubr.bf16.mxu0 0
      %1614 = vmatmul.mubr.bf16.gmra.mrb[0].mxu0 %v975
      %v1615 = vpop.f32.mrb[0].mxu0
      %v1616 = vadd.f32 0.0, %v1615
      %v1617 = vpop.f32.mrb[0].mxu0
      %v1618 = vadd.f32 0.0, %v1617
      %v1619 = vpop.f32.mrb[0].mxu0
      %v1620 = vadd.f32 0.0, %v1619
      %v1621 = vpop.f32.mrb[0].mxu0
      %v1622 = vadd.f32 0.0, %v1621
      %1623 = vmatprep.mubr.bf16.mxu0 0
      %1624 = vmatmul.mubr.bf16.gmra.mrb[0].mxu0 %v1513
      %v1625 = vpop.f32.mrb[0].mxu0
      %v1626 = vadd.f32 0.0, %v1625
      %v1627 = vpop.f32.mrb[0].mxu0
      %v1628 = vadd.f32 0.0, %v1627
      %v1629 = vpop.f32.mrb[0].mxu0
      %v1630 = vadd.f32 0.0, %v1629
      %v1631 = vpop.f32.mrb[0].mxu0
      %v1632 = vadd.f32 0.0, %v1631
      %1633 = vdwg.mxu0
      %v1634 = vadd.f32 %v1458, %v1556
      %v1635 = vadd.f32 %v1459, %v1558
      %v1636 = vadd.f32 %v1460, %v1560
      %v1637 = vadd.f32 %v1461, %v1562
      %v1638 = vadd.f32 %v1462, %v1566
      %v1639 = vadd.f32 %v1463, %v1568
      %v1640 = vadd.f32 %v1464, %v1570
      %v1641 = vadd.f32 %v1465, %v1572
      %v1642 = vadd.f32 %v1466, %v1576
      %v1643 = vadd.f32 %v1467, %v1578
      %v1644 = vadd.f32 %v1468, %v1580
      %v1645 = vadd.f32 %v1469, %v1582
      %v1646 = vadd.f32 %v1470, %v1586
      %v1647 = vadd.f32 %v1471, %v1588
      %v1648 = vadd.f32 %v1472, %v1590
      %v1649 = vadd.f32 %v1473, %v1592
      %v1650 = vadd.f32 %v1474, %v1596
      %v1651 = vadd.f32 %v1475, %v1598
      %v1652 = vadd.f32 %v1476, %v1600
      %v1653 = vadd.f32 %v1477, %v1602
      %v1654 = vadd.f32 %v1478, %v1606
      %v1655 = vadd.f32 %v1479, %v1608
      %v1656 = vadd.f32 %v1480, %v1610
      %v1657 = vadd.f32 %v1481, %v1612
      %v1658 = vadd.f32 %v1482, %v1616
      %v1659 = vadd.f32 %v1483, %v1618
      %v1660 = vadd.f32 %v1484, %v1620
      %v1661 = vadd.f32 %v1485, %v1622
      %v1662 = vadd.f32 %v1486, %v1626
      %v1663 = vadd.f32 %v1487, %v1628
      %v1664 = vadd.f32 %v1488, %v1630
      %v1665 = vadd.f32 %v1489, %v1632
      %s1666 = scalar_lea.vmem %s1, 24
      %v1667 = vld [vmem:[%s1666] sm:$0xf]
      %v1670 = vunpack.c.l.b16 %v280
      %v1671 = vunpack.c.l.b16 %v281
      %v1672 = vpack.c.b16 %v1671, %v1670
      %v1675 = vunpack.c.l.s4 1983009808
      %v1676 = vunpack.c.0.s8 %v1675
      %v1677 = vlaneseq
      %v1678 = vshrl.u32 %v1677, 7
      %v1679 = vsub.s32 %v1676, %v1678
      %v1680 = vrot.slane %v1667, %v1679
      %v1681 = vcombine.high %v1680, %v1680
      %v1683 = vsel %vm514, %v1672, 0
      %v1686 = vsel %vm539, %v1680, 0
      %v1689 = vsel %vm539, %v1681, 0
      %1691 = vmatprep.subr.bf16.mxu0 %v1689
      %1692 = vmatpush1.bf16.msra.mxu0 %v1686
      %1693 = vmatprep.subr.bf16.mxu0 0
      %1694 = vmatpush1.bf16.msra.mxu0 0
      %1695 = vmatprep.subr.bf16.mxu0 0
      %1696 = vmatpush1.bf16.msra.mxu0 0
      %1697 = vmatprep.subr.bf16.mxu0 0
      %1698 = vmatpush1.bf16.msra.mxu0 0
      %1699 = vmatprep.subr.bf16.mxu0 0
      %1700 = vmatpush1.bf16.msra.mxu0 0
      %1701 = vmatprep.subr.bf16.mxu0 0
      %1702 = vmatpush1.bf16.msra.mxu0 0
      %1703 = vmatprep.subr.bf16.mxu0 0
      %1704 = vmatpush1.bf16.msra.mxu0 0
      %1705 = vmatprep.subr.bf16.mxu0 0
      %1706 = vmatpush1.bf16.msra.mxu0 0
      %1707 = vmatprep.subr.bf16.mxu0 0
      %1708 = vmatpush1.bf16.msra.mxu0 0
      %1709 = vmatprep.subr.bf16.mxu0 0
      %1710 = vmatpush1.bf16.msra.mxu0 0
      %1711 = vmatprep.subr.bf16.mxu0 0
      %1712 = vmatpush1.bf16.msra.mxu0 0
      %1713 = vmatprep.subr.bf16.mxu0 0
      %1714 = vmatpush1.bf16.msra.mxu0 0
      %1715 = vmatprep.subr.bf16.mxu0 0
      %1716 = vmatpush1.bf16.msra.mxu0 0
      %1717 = vmatprep.subr.bf16.mxu0 0
      %1718 = vmatpush1.bf16.msra.mxu0 0
      %1719 = vmatprep.subr.bf16.mxu0 0
      %1720 = vmatpush1.bf16.msra.mxu0 0
      %1721 = vmatprep.subr.bf16.mxu0 0
      %1722 = vmatpush1.bf16.msra.mxu0 0
      %1723 = vmatprep.mubr.bf16.mxu0 0
      %1724 = vmatmul.mubr.bf16.gmra.mrb[0].mxu0 %v715
      %v1725 = vpop.f32.mrb[0].mxu0
      %v1726 = vadd.f32 0.0, %v1725
      %v1727 = vpop.f32.mrb[0].mxu0
      %v1728 = vadd.f32 0.0, %v1727
      %v1729 = vpop.f32.mrb[0].mxu0
      %v1730 = vadd.f32 0.0, %v1729
      %v1731 = vpop.f32.mrb[0].mxu0
      %v1732 = vadd.f32 0.0, %v1731
      %1733 = vmatprep.mubr.bf16.mxu0 0
      %1734 = vmatmul.mubr.bf16.gmra.mrb[0].mxu0 %v718
      %v1735 = vpop.f32.mrb[0].mxu0
      %v1736 = vadd.f32 0.0, %v1735
      %v1737 = vpop.f32.mrb[0].mxu0
      %v1738 = vadd.f32 0.0, %v1737
      %v1739 = vpop.f32.mrb[0].mxu0
      %v1740 = vadd.f32 0.0, %v1739
      %v1741 = vpop.f32.mrb[0].mxu0
      %v1742 = vadd.f32 0.0, %v1741
      %1743 = vmatprep.mubr.bf16.mxu0 0
      %1744 = vmatmul.mubr.bf16.gmra.mrb[0].mxu0 %v721
      %v1745 = vpop.f32.mrb[0].mxu0
      %v1746 = vadd.f32 0.0, %v1745
      %v1747 = vpop.f32.mrb[0].mxu0
      %v1748 = vadd.f32 0.0, %v1747
      %v1749 = vpop.f32.mrb[0].mxu0
      %v1750 = vadd.f32 0.0, %v1749
      %v1751 = vpop.f32.mrb[0].mxu0
      %v1752 = vadd.f32 0.0, %v1751
      %1753 = vmatprep.mubr.bf16.mxu0 0
      %1754 = vmatmul.mubr.bf16.gmra.mrb[0].mxu0 %v724
      %v1755 = vpop.f32.mrb[0].mxu0
      %v1756 = vadd.f32 0.0, %v1755
      %v1757 = vpop.f32.mrb[0].mxu0
      %v1758 = vadd.f32 0.0, %v1757
      %v1759 = vpop.f32.mrb[0].mxu0
      %v1760 = vadd.f32 0.0, %v1759
      %v1761 = vpop.f32.mrb[0].mxu0
      %v1762 = vadd.f32 0.0, %v1761
      %1763 = vmatprep.mubr.bf16.mxu0 0
      %1764 = vmatmul.mubr.bf16.gmra.mrb[0].mxu0 %v727
      %v1765 = vpop.f32.mrb[0].mxu0
      %v1766 = vadd.f32 0.0, %v1765
      %v1767 = vpop.f32.mrb[0].mxu0
      %v1768 = vadd.f32 0.0, %v1767
      %v1769 = vpop.f32.mrb[0].mxu0
      %v1770 = vadd.f32 0.0, %v1769
      %v1771 = vpop.f32.mrb[0].mxu0
      %v1772 = vadd.f32 0.0, %v1771
      %1773 = vmatprep.mubr.bf16.mxu0 0
      %1774 = vmatmul.mubr.bf16.gmra.mrb[0].mxu0 %v730
      %v1775 = vpop.f32.mrb[0].mxu0
      %v1776 = vadd.f32 0.0, %v1775
      %v1777 = vpop.f32.mrb[0].mxu0
      %v1778 = vadd.f32 0.0, %v1777
      %v1779 = vpop.f32.mrb[0].mxu0
      %v1780 = vadd.f32 0.0, %v1779
      %v1781 = vpop.f32.mrb[0].mxu0
      %v1782 = vadd.f32 0.0, %v1781
      %1783 = vmatprep.mubr.bf16.mxu0 0
      %1784 = vmatmul.mubr.bf16.gmra.mrb[0].mxu0 %v1145
      %v1785 = vpop.f32.mrb[0].mxu0
      %v1786 = vadd.f32 0.0, %v1785
      %v1787 = vpop.f32.mrb[0].mxu0
      %v1788 = vadd.f32 0.0, %v1787
      %v1789 = vpop.f32.mrb[0].mxu0
      %v1790 = vadd.f32 0.0, %v1789
      %v1791 = vpop.f32.mrb[0].mxu0
      %v1792 = vadd.f32 0.0, %v1791
      %1793 = vmatprep.mubr.bf16.mxu0 0
      %1794 = vmatmul.mubr.bf16.gmra.mrb[0].mxu0 %v1683
      %v1795 = vpop.f32.mrb[0].mxu0
      %v1796 = vadd.f32 0.0, %v1795
      %v1797 = vpop.f32.mrb[0].mxu0
      %v1798 = vadd.f32 0.0, %v1797
      %v1799 = vpop.f32.mrb[0].mxu0
      %v1800 = vadd.f32 0.0, %v1799
      %v1801 = vpop.f32.mrb[0].mxu0
      %v1802 = vadd.f32 0.0, %v1801
      %1803 = vdwg.mxu0
      %v1804 = vadd.f32 %v1634, %v1726
      %v1805 = vadd.f32 %v1635, %v1728
      %v1806 = vadd.f32 %v1636, %v1730
      %v1807 = vadd.f32 %v1637, %v1732
      %v1808 = vadd.f32 %v1638, %v1736
      %v1809 = vadd.f32 %v1639, %v1738
      %v1810 = vadd.f32 %v1640, %v1740
      %v1811 = vadd.f32 %v1641, %v1742
      %v1812 = vadd.f32 %v1642, %v1746
      %v1813 = vadd.f32 %v1643, %v1748
      %v1814 = vadd.f32 %v1644, %v1750
      %v1815 = vadd.f32 %v1645, %v1752
      %v1816 = vadd.f32 %v1646, %v1756
      %v1817 = vadd.f32 %v1647, %v1758
      %v1818 = vadd.f32 %v1648, %v1760
      %v1819 = vadd.f32 %v1649, %v1762
      %v1820 = vadd.f32 %v1650, %v1766
      %v1821 = vadd.f32 %v1651, %v1768
      %v1822 = vadd.f32 %v1652, %v1770
      %v1823 = vadd.f32 %v1653, %v1772
      %v1824 = vadd.f32 %v1654, %v1776
      %v1825 = vadd.f32 %v1655, %v1778
      %v1826 = vadd.f32 %v1656, %v1780
      %v1827 = vadd.f32 %v1657, %v1782
      %v1828 = vadd.f32 %v1658, %v1786
      %v1829 = vadd.f32 %v1659, %v1788
      %v1830 = vadd.f32 %v1660, %v1790
      %v1831 = vadd.f32 %v1661, %v1792
      %v1832 = vadd.f32 %v1662, %v1796
      %v1833 = vadd.f32 %v1663, %v1798
      %v1834 = vadd.f32 %v1664, %v1800
      %v1835 = vadd.f32 %v1665, %v1802
      %v1837 = vshrl.u32 %v280, 16
      %v1839 = vrot.slane %v1837, 4
      %v1840 = vshll.u32 %v280, 16
      %v1842 = vrot.slane %v1840, 5
      %v1843 = vor.u32 %v1839, %v1842
      %v1844 = vrot.slane %v1843, 4
      %v1846 = vshll.u32 %v281, 16
      %v1848 = vrot.slane %v1846, 5
      %v1849 = vsel %vm286, %v1844, %v1848
      %v1850 = vshrl.u32 %v281, 16
      %v1852 = vrot.slane %v1850, 4
      %v1853 = vor.u32 %v1852, %v1848
      %v1854 = vrot.slane %v1853, 4
      %v1856 = vshll.u32 %v282, 16
      %v1858 = vrot.slane %v1856, 5
      %v1859 = vsel %vm286, %v1854, %v1858
      %s1860 = scalar_lea.vmem %s1, 28
      %v1861 = vld [vmem:[%s1860] sm:$0xf]
      %v1862 = vunpack.c.l.b16 %v1849
      %v1863 = vunpack.c.l.b16 %v1859
      %v1864 = vpack.c.b16 %v1863, %v1862
      %v1867 = vunpack.c.l.s4 1983009808
      %v1868 = vunpack.c.0.s8 %v1867
      %v1869 = vlaneseq
      %v1870 = vshrl.u32 %v1869, 7
      %v1871 = vsub.s32 %v1868, %v1870
      %v1872 = vrot.slane %v1861, %v1871
      %v1873 = vcombine.high %v1872, %v1872
      %v1875 = vsel %vm514, %v1864, 0
      %v1878 = vsel %vm539, %v1872, 0
      %v1881 = vsel %vm539, %v1873, 0
      %1883 = vmatprep.subr.bf16.mxu0 %v1881
      %1884 = vmatpush1.bf16.msra.mxu0 %v1878
      %1885 = vmatprep.subr.bf16.mxu0 0
      %1886 = vmatpush1.bf16.msra.mxu0 0
      %1887 = vmatprep.subr.bf16.mxu0 0
      %1888 = vmatpush1.bf16.msra.mxu0 0
      %1889 = vmatprep.subr.bf16.mxu0 0
      %1890 = vmatpush1.bf16.msra.mxu0 0
      %1891 = vmatprep.subr.bf16.mxu0 0
      %1892 = vmatpush1.bf16.msra.mxu0 0
      %1893 = vmatprep.subr.bf16.mxu0 0
      %1894 = vmatpush1.bf16.msra.mxu0 0
      %1895 = vmatprep.subr.bf16.mxu0 0
      %1896 = vmatpush1.bf16.msra.mxu0 0
      %1897 = vmatprep.subr.bf16.mxu0 0
      %1898 = vmatpush1.bf16.msra.mxu0 0
      %1899 = vmatprep.subr.bf16.mxu0 0
      %1900 = vmatpush1.bf16.msra.mxu0 0
      %1901 = vmatprep.subr.bf16.mxu0 0
      %1902 = vmatpush1.bf16.msra.mxu0 0
      %1903 = vmatprep.subr.bf16.mxu0 0
      %1904 = vmatpush1.bf16.msra.mxu0 0
      %1905 = vmatprep.subr.bf16.mxu0 0
      %1906 = vmatpush1.bf16.msra.mxu0 0
      %1907 = vmatprep.subr.bf16.mxu0 0
      %1908 = vmatpush1.bf16.msra.mxu0 0
      %1909 = vmatprep.subr.bf16.mxu0 0
      %1910 = vmatpush1.bf16.msra.mxu0 0
      %1911 = vmatprep.subr.bf16.mxu0 0
      %1912 = vmatpush1.bf16.msra.mxu0 0
      %1913 = vmatprep.subr.bf16.mxu0 0
      %1914 = vmatpush1.bf16.msra.mxu0 0
      %1915 = vmatprep.mubr.bf16.mxu0 0
      %1916 = vmatmul.mubr.bf16.gmra.mrb[0].mxu0 %v522
      %v1917 = vpop.f32.mrb[0].mxu0
      %v1918 = vadd.f32 0.0, %v1917
      %v1919 = vpop.f32.mrb[0].mxu0
      %v1920 = vadd.f32 0.0, %v1919
      %v1921 = vpop.f32.mrb[0].mxu0
      %v1922 = vadd.f32 0.0, %v1921
      %v1923 = vpop.f32.mrb[0].mxu0
      %v1924 = vadd.f32 0.0, %v1923
      %1925 = vmatprep.mubr.bf16.mxu0 0
      %1926 = vmatmul.mubr.bf16.gmra.mrb[0].mxu0 %v525
      %v1927 = vpop.f32.mrb[0].mxu0
      %v1928 = vadd.f32 0.0, %v1927
      %v1929 = vpop.f32.mrb[0].mxu0
      %v1930 = vadd.f32 0.0, %v1929
      %v1931 = vpop.f32.mrb[0].mxu0
      %v1932 = vadd.f32 0.0, %v1931
      %v1933 = vpop.f32.mrb[0].mxu0
      %v1934 = vadd.f32 0.0, %v1933
      %1935 = vmatprep.mubr.bf16.mxu0 0
      %1936 = vmatmul.mubr.bf16.gmra.mrb[0].mxu0 %v528
      %v1937 = vpop.f32.mrb[0].mxu0
      %v1938 = vadd.f32 0.0, %v1937
      %v1939 = vpop.f32.mrb[0].mxu0
      %v1940 = vadd.f32 0.0, %v1939
      %v1941 = vpop.f32.mrb[0].mxu0
      %v1942 = vadd.f32 0.0, %v1941
      %v1943 = vpop.f32.mrb[0].mxu0
      %v1944 = vadd.f32 0.0, %v1943
      %1945 = vmatprep.mubr.bf16.mxu0 0
      %1946 = vmatmul.mubr.bf16.gmra.mrb[0].mxu0 %v531
      %v1947 = vpop.f32.mrb[0].mxu0
      %v1948 = vadd.f32 0.0, %v1947
      %v1949 = vpop.f32.mrb[0].mxu0
      %v1950 = vadd.f32 0.0, %v1949
      %v1951 = vpop.f32.mrb[0].mxu0
      %v1952 = vadd.f32 0.0, %v1951
      %v1953 = vpop.f32.mrb[0].mxu0
      %v1954 = vadd.f32 0.0, %v1953
      %1955 = vmatprep.mubr.bf16.mxu0 0
      %1956 = vmatmul.mubr.bf16.gmra.mrb[0].mxu0 %v534
      %v1957 = vpop.f32.mrb[0].mxu0
      %v1958 = vadd.f32 0.0, %v1957
      %v1959 = vpop.f32.mrb[0].mxu0
      %v1960 = vadd.f32 0.0, %v1959
      %v1961 = vpop.f32.mrb[0].mxu0
      %v1962 = vadd.f32 0.0, %v1961
      %v1963 = vpop.f32.mrb[0].mxu0
      %v1964 = vadd.f32 0.0, %v1963
      %1965 = vmatprep.mubr.bf16.mxu0 0
      %1966 = vmatmul.mubr.bf16.gmra.mrb[0].mxu0 %v537
      %v1967 = vpop.f32.mrb[0].mxu0
      %v1968 = vadd.f32 0.0, %v1967
      %v1969 = vpop.f32.mrb[0].mxu0
      %v1970 = vadd.f32 0.0, %v1969
      %v1971 = vpop.f32.mrb[0].mxu0
      %v1972 = vadd.f32 0.0, %v1971
      %v1973 = vpop.f32.mrb[0].mxu0
      %v1974 = vadd.f32 0.0, %v1973
      %1975 = vmatprep.mubr.bf16.mxu0 0
      %1976 = vmatmul.mubr.bf16.gmra.mrb[0].mxu0 %v1337
      %v1977 = vpop.f32.mrb[0].mxu0
      %v1978 = vadd.f32 0.0, %v1977
      %v1979 = vpop.f32.mrb[0].mxu0
      %v1980 = vadd.f32 0.0, %v1979
      %v1981 = vpop.f32.mrb[0].mxu0
      %v1982 = vadd.f32 0.0, %v1981
      %v1983 = vpop.f32.mrb[0].mxu0
      %v1984 = vadd.f32 0.0, %v1983
      %1985 = vmatprep.mubr.bf16.mxu0 0
      %1986 = vmatmul.mubr.bf16.gmra.mrb[0].mxu0 %v1875
      %v1987 = vpop.f32.mrb[0].mxu0
      %v1988 = vadd.f32 0.0, %v1987
      %v1989 = vpop.f32.mrb[0].mxu0
      %v1990 = vadd.f32 0.0, %v1989
      %v1991 = vpop.f32.mrb[0].mxu0
      %v1992 = vadd.f32 0.0, %v1991
      %v1993 = vpop.f32.mrb[0].mxu0
      %v1994 = vadd.f32 0.0, %v1993
      %1995 = vdwg.mxu0
      %v1996 = vadd.f32 %v1804, %v1918
      %v1997 = vadd.f32 %v1805, %v1920
      %v1998 = vadd.f32 %v1806, %v1922
      %v1999 = vadd.f32 %v1807, %v1924
      %v2000 = vadd.f32 %v1808, %v1928
      %v2001 = vadd.f32 %v1809, %v1930
      %v2002 = vadd.f32 %v1810, %v1932
      %v2003 = vadd.f32 %v1811, %v1934
      %v2004 = vadd.f32 %v1812, %v1938
      %v2005 = vadd.f32 %v1813, %v1940
      %v2006 = vadd.f32 %v1814, %v1942
      %v2007 = vadd.f32 %v1815, %v1944
      %v2008 = vadd.f32 %v1816, %v1948
      %v2009 = vadd.f32 %v1817, %v1950
      %v2010 = vadd.f32 %v1818, %v1952
      %v2011 = vadd.f32 %v1819, %v1954
      %v2012 = vadd.f32 %v1820, %v1958
      %v2013 = vadd.f32 %v1821, %v1960
      %v2014 = vadd.f32 %v1822, %v1962
      %v2015 = vadd.f32 %v1823, %v1964
      %v2016 = vadd.f32 %v1824, %v1968
      %v2017 = vadd.f32 %v1825, %v1970
      %v2018 = vadd.f32 %v1826, %v1972
      %v2019 = vadd.f32 %v1827, %v1974
      %v2020 = vadd.f32 %v1828, %v1978
      %v2021 = vadd.f32 %v1829, %v1980
      %v2022 = vadd.f32 %v1830, %v1982
      %v2023 = vadd.f32 %v1831, %v1984
      %v2024 = vadd.f32 %v1832, %v1988
      %v2025 = vadd.f32 %v1833, %v1990
      %v2026 = vadd.f32 %v1834, %v1992
      %v2027 = vadd.f32 %v1835, %v1994
      %v2029 = vrot.slane %v280, 5
      %v2030 = vrot.slane %v2029, 4
      %v2031 = vrot.slane %v281, 5
      %v2032 = vsel %vm861, %v2030, %v2031
      %v2033 = vrot.slane %v2031, 4
      %v2034 = vrot.slane %v282, 5
      %v2035 = vsel %vm861, %v2033, %v2034
      %s2036 = scalar_lea.vmem %s1, 32
      %v2037 = vld [vmem:[%s2036] sm:$0xf]
      %v2038 = vunpack.c.l.b16 %v2032
      %v2039 = vunpack.c.l.b16 %v2035
      %v2040 = vpack.c.b16 %v2039, %v2038
      %v2043 = vunpack.c.l.s4 1983009808
      %v2044 = vunpack.c.0.s8 %v2043
      %v2045 = vlaneseq
      %v2046 = vshrl.u32 %v2045, 7
      %v2047 = vsub.s32 %v2044, %v2046
      %v2048 = vrot.slane %v2037, %v2047
      %v2049 = vcombine.high %v2048, %v2048
      %v2051 = vsel %vm514, %v2040, 0
      %v2054 = vsel %vm539, %v2048, 0
      %v2057 = vsel %vm539, %v2049, 0
      %2059 = vmatprep.subr.bf16.mxu0 %v2057
      %2060 = vmatpush1.bf16.msra.mxu0 %v2054
      %2061 = vmatprep.subr.bf16.mxu0 0
      %2062 = vmatpush1.bf16.msra.mxu0 0
      %2063 = vmatprep.subr.bf16.mxu0 0
      %2064 = vmatpush1.bf16.msra.mxu0 0
      %2065 = vmatprep.subr.bf16.mxu0 0
      %2066 = vmatpush1.bf16.msra.mxu0 0
      %2067 = vmatprep.subr.bf16.mxu0 0
      %2068 = vmatpush1.bf16.msra.mxu0 0
      %2069 = vmatprep.subr.bf16.mxu0 0
      %2070 = vmatpush1.bf16.msra.mxu0 0
      %2071 = vmatprep.subr.bf16.mxu0 0
      %2072 = vmatpush1.bf16.msra.mxu0 0
      %2073 = vmatprep.subr.bf16.mxu0 0
      %2074 = vmatpush1.bf16.msra.mxu0 0
      %2075 = vmatprep.subr.bf16.mxu0 0
      %2076 = vmatpush1.bf16.msra.mxu0 0
      %2077 = vmatprep.subr.bf16.mxu0 0
      %2078 = vmatpush1.bf16.msra.mxu0 0
      %2079 = vmatprep.subr.bf16.mxu0 0
      %2080 = vmatpush1.bf16.msra.mxu0 0
      %2081 = vmatprep.subr.bf16.mxu0 0
      %2082 = vmatpush1.bf16.msra.mxu0 0
      %2083 = vmatprep.subr.bf16.mxu0 0
      %2084 = vmatpush1.bf16.msra.mxu0 0
      %2085 = vmatprep.subr.bf16.mxu0 0
      %2086 = vmatpush1.bf16.msra.mxu0 0
      %2087 = vmatprep.subr.bf16.mxu0 0
      %2088 = vmatpush1.bf16.msra.mxu0 0
      %2089 = vmatprep.subr.bf16.mxu0 0
      %2090 = vmatpush1.bf16.msra.mxu0 0
      %2091 = vmatprep.mubr.bf16.mxu0 0
      %2092 = vmatmul.mubr.bf16.gmra.mrb[0].mxu0 %v960
      %v2093 = vpop.f32.mrb[0].mxu0
      %v2094 = vadd.f32 0.0, %v2093
      %v2095 = vpop.f32.mrb[0].mxu0
      %v2096 = vadd.f32 0.0, %v2095
      %v2097 = vpop.f32.mrb[0].mxu0
      %v2098 = vadd.f32 0.0, %v2097
      %v2099 = vpop.f32.mrb[0].mxu0
      %v2100 = vadd.f32 0.0, %v2099
      %2101 = vmatprep.mubr.bf16.mxu0 0
      %2102 = vmatmul.mubr.bf16.gmra.mrb[0].mxu0 %v963
      %v2103 = vpop.f32.mrb[0].mxu0
      %v2104 = vadd.f32 0.0, %v2103
      %v2105 = vpop.f32.mrb[0].mxu0
      %v2106 = vadd.f32 0.0, %v2105
      %v2107 = vpop.f32.mrb[0].mxu0
      %v2108 = vadd.f32 0.0, %v2107
      %v2109 = vpop.f32.mrb[0].mxu0
      %v2110 = vadd.f32 0.0, %v2109
      %2111 = vmatprep.mubr.bf16.mxu0 0
      %2112 = vmatmul.mubr.bf16.gmra.mrb[0].mxu0 %v966
      %v2113 = vpop.f32.mrb[0].mxu0
      %v2114 = vadd.f32 0.0, %v2113
      %v2115 = vpop.f32.mrb[0].mxu0
      %v2116 = vadd.f32 0.0, %v2115
      %v2117 = vpop.f32.mrb[0].mxu0
      %v2118 = vadd.f32 0.0, %v2117
      %v2119 = vpop.f32.mrb[0].mxu0
      %v2120 = vadd.f32 0.0, %v2119
      %2121 = vmatprep.mubr.bf16.mxu0 0
      %2122 = vmatmul.mubr.bf16.gmra.mrb[0].mxu0 %v969
      %v2123 = vpop.f32.mrb[0].mxu0
      %v2124 = vadd.f32 0.0, %v2123
      %v2125 = vpop.f32.mrb[0].mxu0
      %v2126 = vadd.f32 0.0, %v2125
      %v2127 = vpop.f32.mrb[0].mxu0
      %v2128 = vadd.f32 0.0, %v2127
      %v2129 = vpop.f32.mrb[0].mxu0
      %v2130 = vadd.f32 0.0, %v2129
      %2131 = vmatprep.mubr.bf16.mxu0 0
      %2132 = vmatmul.mubr.bf16.gmra.mrb[0].mxu0 %v972
      %v2133 = vpop.f32.mrb[0].mxu0
      %v2134 = vadd.f32 0.0, %v2133
      %v2135 = vpop.f32.mrb[0].mxu0
      %v2136 = vadd.f32 0.0, %v2135
      %v2137 = vpop.f32.mrb[0].mxu0
      %v2138 = vadd.f32 0.0, %v2137
      %v2139 = vpop.f32.mrb[0].mxu0
      %v2140 = vadd.f32 0.0, %v2139
      %2141 = vmatprep.mubr.bf16.mxu0 0
      %2142 = vmatmul.mubr.bf16.gmra.mrb[0].mxu0 %v975
      %v2143 = vpop.f32.mrb[0].mxu0
      %v2144 = vadd.f32 0.0, %v2143
      %v2145 = vpop.f32.mrb[0].mxu0
      %v2146 = vadd.f32 0.0, %v2145
      %v2147 = vpop.f32.mrb[0].mxu0
      %v2148 = vadd.f32 0.0, %v2147
      %v2149 = vpop.f32.mrb[0].mxu0
      %v2150 = vadd.f32 0.0, %v2149
      %2151 = vmatprep.mubr.bf16.mxu0 0
      %2152 = vmatmul.mubr.bf16.gmra.mrb[0].mxu0 %v1513
      %v2153 = vpop.f32.mrb[0].mxu0
      %v2154 = vadd.f32 0.0, %v2153
      %v2155 = vpop.f32.mrb[0].mxu0
      %v2156 = vadd.f32 0.0, %v2155
      %v2157 = vpop.f32.mrb[0].mxu0
      %v2158 = vadd.f32 0.0, %v2157
      %v2159 = vpop.f32.mrb[0].mxu0
      %v2160 = vadd.f32 0.0, %v2159
      %2161 = vmatprep.mubr.bf16.mxu0 0
      %2162 = vmatmul.mubr.bf16.gmra.mrb[0].mxu0 %v2051
      %v2163 = vpop.f32.mrb[0].mxu0
      %v2164 = vadd.f32 0.0, %v2163
      %v2165 = vpop.f32.mrb[0].mxu0
      %v2166 = vadd.f32 0.0, %v2165
      %v2167 = vpop.f32.mrb[0].mxu0
      %v2168 = vadd.f32 0.0, %v2167
      %v2169 = vpop.f32.mrb[0].mxu0
      %v2170 = vadd.f32 0.0, %v2169
      %2171 = vdwg.mxu0
      %v2172 = vadd.f32 %v1996, %v2094
      %v2173 = vadd.f32 %v1997, %v2096
      %v2174 = vadd.f32 %v1998, %v2098
      %v2175 = vadd.f32 %v1999, %v2100
      %v2176 = vadd.f32 %v2000, %v2104
      %v2177 = vadd.f32 %v2001, %v2106
      %v2178 = vadd.f32 %v2002, %v2108
      %v2179 = vadd.f32 %v2003, %v2110
      %v2180 = vadd.f32 %v2004, %v2114
      %v2181 = vadd.f32 %v2005, %v2116
      %v2182 = vadd.f32 %v2006, %v2118
      %v2183 = vadd.f32 %v2007, %v2120
      %v2184 = vadd.f32 %v2008, %v2124
      %v2185 = vadd.f32 %v2009, %v2126
      %v2186 = vadd.f32 %v2010, %v2128
      %v2187 = vadd.f32 %v2011, %v2130
      %v2188 = vadd.f32 %v2012, %v2134
      %v2189 = vadd.f32 %v2013, %v2136
      %v2190 = vadd.f32 %v2014, %v2138
      %v2191 = vadd.f32 %v2015, %v2140
      %v2192 = vadd.f32 %v2016, %v2144
      %v2193 = vadd.f32 %v2017, %v2146
      %v2194 = vadd.f32 %v2018, %v2148
      %v2195 = vadd.f32 %v2019, %v2150
      %v2196 = vadd.f32 %v2020, %v2154
      %v2197 = vadd.f32 %v2021, %v2156
      %v2198 = vadd.f32 %v2022, %v2158
      %v2199 = vadd.f32 %v2023, %v2160
      %v2200 = vadd.f32 %v2024, %v2164
      %v2201 = vadd.f32 %v2025, %v2166
      %v2202 = vadd.f32 %v2026, %v2168
      %v2203 = vadd.f32 %v2027, %v2170
      %v2204 = vld [vmem:[%s2] sm:$0x3]
      %v2206 = vlaneseq
      %v2207 = vshrl.u32 %v2206, 7
      %v2208 = vsub.s32 0, %v2207
      %v2209 = vrot.slane %v2204, %v2208
      %v2210 = vlaneseq
      %v2211 = vshrl.u32 %v2210, 7
      %v2212 = vsub.s32 1, %v2211
      %v2213 = vrot.slane %v2204, %v2212
      %v2216 = vadd.f32 %v2172, %v2209
      %v2217 = vadd.f32 %v2173, %v2213
      %v2218 = vadd.f32 %v2174, %v2209
      %v2219 = vadd.f32 %v2175, %v2213
      %v2220 = vadd.f32 %v2176, %v2209
      %v2221 = vadd.f32 %v2177, %v2213
      %v2222 = vadd.f32 %v2178, %v2209
      %v2223 = vadd.f32 %v2179, %v2213
      %v2224 = vadd.f32 %v2180, %v2209
      %v2225 = vadd.f32 %v2181, %v2213
      %v2226 = vadd.f32 %v2182, %v2209
      %v2227 = vadd.f32 %v2183, %v2213
      %v2228 = vadd.f32 %v2184, %v2209
      %v2229 = vadd.f32 %v2185, %v2213
      %v2230 = vadd.f32 %v2186, %v2209
      %v2231 = vadd.f32 %v2187, %v2213
      %v2232 = vadd.f32 %v2188, %v2209
      %v2233 = vadd.f32 %v2189, %v2213
      %v2234 = vadd.f32 %v2190, %v2209
      %v2235 = vadd.f32 %v2191, %v2213
      %v2236 = vadd.f32 %v2192, %v2209
      %v2237 = vadd.f32 %v2193, %v2213
      %v2238 = vadd.f32 %v2194, %v2209
      %v2239 = vadd.f32 %v2195, %v2213
      %v2240 = vadd.f32 %v2196, %v2209
      %v2241 = vadd.f32 %v2197, %v2213
      %v2242 = vadd.f32 %v2198, %v2209
      %v2243 = vadd.f32 %v2199, %v2213
      %v2244 = vadd.f32 %v2200, %v2209
      %v2245 = vadd.f32 %v2201, %v2213
      %v2246 = vadd.f32 %v2202, %v2209
      %v2247 = vadd.f32 %v2203, %v2213
      %v2248 = vmax.f32 %v2216, 0.0
      %v2249 = vmax.f32 %v2217, 0.0
      %v2250 = vmax.f32 %v2218, 0.0
      %v2251 = vmax.f32 %v2219, 0.0
      %v2252 = vmax.f32 %v2220, 0.0
      %v2253 = vmax.f32 %v2221, 0.0
      %v2254 = vmax.f32 %v2222, 0.0
      %v2255 = vmax.f32 %v2223, 0.0
      %v2256 = vmax.f32 %v2224, 0.0
      %v2257 = vmax.f32 %v2225, 0.0
      %v2258 = vmax.f32 %v2226, 0.0
      %v2259 = vmax.f32 %v2227, 0.0
      %v2260 = vmax.f32 %v2228, 0.0
      %v2261 = vmax.f32 %v2229, 0.0
      %v2262 = vmax.f32 %v2230, 0.0
      %v2263 = vmax.f32 %v2231, 0.0
      %v2264 = vmax.f32 %v2232, 0.0
      %v2265 = vmax.f32 %v2233, 0.0
      %v2266 = vmax.f32 %v2234, 0.0
      %v2267 = vmax.f32 %v2235, 0.0
      %v2268 = vmax.f32 %v2236, 0.0
      %v2269 = vmax.f32 %v2237, 0.0
      %v2270 = vmax.f32 %v2238, 0.0
      %v2271 = vmax.f32 %v2239, 0.0
      %v2272 = vmax.f32 %v2240, 0.0
      %v2273 = vmax.f32 %v2241, 0.0
      %v2274 = vmax.f32 %v2242, 0.0
      %v2275 = vmax.f32 %v2243, 0.0
      %v2276 = vmax.f32 %v2244, 0.0
      %v2277 = vmax.f32 %v2245, 0.0
      %v2278 = vmax.f32 %v2246, 0.0
      %v2279 = vmax.f32 %v2247, 0.0
      %v2280 = vpack.c.bf16 %v2250, %v2248
      %v2281 = vpack.c.bf16 %v2251, %v2249
      %v2282 = vpack.c.bf16 %v2254, %v2252
      %v2283 = vpack.c.bf16 %v2255, %v2253
      %v2284 = vpack.c.bf16 %v2258, %v2256
      %v2285 = vpack.c.bf16 %v2259, %v2257
      %v2286 = vpack.c.bf16 %v2262, %v2260
      %v2287 = vpack.c.bf16 %v2263, %v2261
      %v2288 = vpack.c.bf16 %v2266, %v2264
      %v2289 = vpack.c.bf16 %v2267, %v2265
      %v2290 = vpack.c.bf16 %v2270, %v2268
      %v2291 = vpack.c.bf16 %v2271, %v2269
      %v2292 = vpack.c.bf16 %v2274, %v2272
      %v2293 = vpack.c.bf16 %v2275, %v2273
      %v2294 = vpack.c.bf16 %v2278, %v2276
      %v2295 = vpack.c.bf16 %v2279, %v2277
      %v2296 = vld [vmem:[%s3] sm:$0xf]
      %v2297 = vld [vmem:[%s3 + $0x4] sm:$0xf]
      %v2298 = vld [vmem:[%s3 + $0x8] sm:$0xf]
      %v2299 = vld [vmem:[%s3 + $0xc] sm:$0xf]
      %v2300 = vld [vmem:[%s3 + $0x10] sm:$0xf]
      %v2301 = vld [vmem:[%s3 + $0x14] sm:$0xf]
      %v2302 = vld [vmem:[%s3 + $0x18] sm:$0xf]
      %v2303 = vld [vmem:[%s3 + $0x1c] sm:$0xf]
      %v2304 = vld [vmem:[%s3 + $0x20] sm:$0xf]
      %v2305 = vld [vmem:[%s3 + $0x24] sm:$0xf]
      %v2306 = vld [vmem:[%s3 + $0x28] sm:$0xf]
      %v2307 = vld [vmem:[%s3 + $0x2c] sm:$0xf]
      %v2308 = vld [vmem:[%s3 + $0x30] sm:$0xf]
      %v2309 = vld [vmem:[%s3 + $0x34] sm:$0xf]
      %v2310 = vld [vmem:[%s3 + $0x38] sm:$0xf]
      %v2311 = vld [vmem:[%s3 + $0x3c] sm:$0xf]
      %v2312 = vld [vmem:[%s3 + $0x40] sm:$0xf]
      %v2313 = vld [vmem:[%s3 + $0x44] sm:$0xf]
      %v2314 = vld [vmem:[%s3 + $0x48] sm:$0xf]
      %v2315 = vld [vmem:[%s3 + $0x4c] sm:$0xf]
      %v2316 = vld [vmem:[%s3 + $0x50] sm:$0xf]
      %v2317 = vld [vmem:[%s3 + $0x54] sm:$0xf]
      %v2318 = vld [vmem:[%s3 + $0x58] sm:$0xf]
      %v2319 = vld [vmem:[%s3 + $0x5c] sm:$0xf]
      %v2320 = vld [vmem:[%s3 + $0x60] sm:$0xf]
      %v2321 = vld [vmem:[%s3 + $0x64] sm:$0xf]
      %v2322 = vld [vmem:[%s3 + $0x68] sm:$0xf]
      %v2323 = vld [vmem:[%s3 + $0x6c] sm:$0xf]
      %v2324 = vld [vmem:[%s3 + $0x70] sm:$0xf]
      %v2325 = vld [vmem:[%s3 + $0x74] sm:$0xf]
      %v2326 = vld [vmem:[%s3 + $0x78] sm:$0xf]
      %v2327 = vld [vmem:[%s3 + $0x7c] sm:$0xf]
      %v2328 = vld [vmem:[%s4] sm:$0x1]
      %v2330 = vlaneseq
      %v2331 = vshrl.u32 %v2330, 7
      %v2332 = vsub.s32 0, %v2331
      %v2333 = vrot.slane %v2328, %v2332
      %v2367 = vunpack.c.l.b16 %v2296
      %v2368 = vunpack.c.l.b16 %v2297
      %v2369 = vunpack.c.l.b16 %v2298
      %v2370 = vunpack.c.l.b16 %v2299
      %v2371 = vunpack.c.l.b16 %v2300
      %v2372 = vunpack.c.l.b16 %v2301
      %v2373 = vunpack.c.l.b16 %v2302
      %v2374 = vunpack.c.l.b16 %v2303
      %v2375 = vunpack.c.l.b16 %v2304
      %v2376 = vunpack.c.l.b16 %v2305
      %v2377 = vunpack.c.l.b16 %v2306
      %v2378 = vunpack.c.l.b16 %v2307
      %v2379 = vunpack.c.l.b16 %v2308
      %v2380 = vunpack.c.l.b16 %v2309
      %v2381 = vunpack.c.l.b16 %v2310
      %v2382 = vunpack.c.l.b16 %v2311
      %v2383 = vunpack.c.l.b16 %v2312
      %v2384 = vunpack.c.l.b16 %v2313
      %v2385 = vunpack.c.l.b16 %v2314
      %v2386 = vunpack.c.l.b16 %v2315
      %v2387 = vunpack.c.l.b16 %v2316
      %v2388 = vunpack.c.l.b16 %v2317
      %v2389 = vunpack.c.l.b16 %v2318
      %v2390 = vunpack.c.l.b16 %v2319
      %v2391 = vunpack.c.l.b16 %v2320
      %v2392 = vunpack.c.l.b16 %v2321
      %v2393 = vunpack.c.l.b16 %v2322
      %v2394 = vunpack.c.l.b16 %v2323
      %v2395 = vunpack.c.l.b16 %v2324
      %v2396 = vunpack.c.l.b16 %v2325
      %v2397 = vunpack.c.l.b16 %v2326
      %v2398 = vunpack.c.l.b16 %v2327
      %v2399 = vpack.c.b16 %v2368, %v2367
      %v2400 = vpack.c.b16 %v2370, %v2369
      %v2401 = vpack.c.b16 %v2372, %v2371
      %v2402 = vpack.c.b16 %v2374, %v2373
      %v2403 = vpack.c.b16 %v2376, %v2375
      %v2404 = vpack.c.b16 %v2378, %v2377
      %v2405 = vpack.c.b16 %v2380, %v2379
      %v2406 = vpack.c.b16 %v2382, %v2381
      %v2407 = vpack.c.b16 %v2384, %v2383
      %v2408 = vpack.c.b16 %v2386, %v2385
      %v2409 = vpack.c.b16 %v2388, %v2387
      %v2410 = vpack.c.b16 %v2390, %v2389
      %v2411 = vpack.c.b16 %v2392, %v2391
      %v2412 = vpack.c.b16 %v2394, %v2393
      %v2413 = vpack.c.b16 %v2396, %v2395
      %v2414 = vpack.c.b16 %v2398, %v2397
      %2431 = vmatprep.subr.bf16.mxu0 0
      %2432 = vmatpush1.bf16.msra.mxu0 %v2399
      %2433 = vmatprep.subr.bf16.mxu0 0
      %2434 = vmatpush1.bf16.msra.mxu0 %v2400
      %2435 = vmatprep.subr.bf16.mxu0 0
      %2436 = vmatpush1.bf16.msra.mxu0 %v2401
      %2437 = vmatprep.subr.bf16.mxu0 0
      %2438 = vmatpush1.bf16.msra.mxu0 %v2402
      %2439 = vmatprep.subr.bf16.mxu0 0
      %2440 = vmatpush1.bf16.msra.mxu0 %v2403
      %2441 = vmatprep.subr.bf16.mxu0 0
      %2442 = vmatpush1.bf16.msra.mxu0 %v2404
      %2443 = vmatprep.subr.bf16.mxu0 0
      %2444 = vmatpush1.bf16.msra.mxu0 %v2405
      %2445 = vmatprep.subr.bf16.mxu0 0
      %2446 = vmatpush1.bf16.msra.mxu0 %v2406
      %2447 = vmatprep.subr.bf16.mxu0 0
      %2448 = vmatpush1.bf16.msra.mxu0 %v2407
      %2449 = vmatprep.subr.bf16.mxu0 0
      %2450 = vmatpush1.bf16.msra.mxu0 %v2408
      %2451 = vmatprep.subr.bf16.mxu0 0
      %2452 = vmatpush1.bf16.msra.mxu0 %v2409
      %2453 = vmatprep.subr.bf16.mxu0 0
      %2454 = vmatpush1.bf16.msra.mxu0 %v2410
      %2455 = vmatprep.subr.bf16.mxu0 0
      %2456 = vmatpush1.bf16.msra.mxu0 %v2411
      %2457 = vmatprep.subr.bf16.mxu0 0
      %2458 = vmatpush1.bf16.msra.mxu0 %v2412
      %2459 = vmatprep.subr.bf16.mxu0 0
      %2460 = vmatpush1.bf16.msra.mxu0 %v2413
      %2461 = vmatprep.subr.bf16.mxu0 0
      %2462 = vmatpush1.bf16.msra.mxu0 %v2414
      %2463 = vmatprep.mubr.bf16.mxu0 %v2281
      %2464 = vmatmul.mubr.bf16.gmra.mrb[0].mxu0 %v2280
      %v2465 = vpop.f32.mrb[0].mxu0
      %v2466 = vadd.f32 %v2333, %v2465
      %v2467 = vpop.f32.mrb[0].mxu0
      %v2468 = vpop.f32.mrb[0].mxu0
      %v2469 = vadd.f32 %v2333, %v2468
      %v2470 = vpop.f32.mrb[0].mxu0
      %2471 = vmatprep.mubr.bf16.mxu0 %v2283
      %2472 = vmatmul.mubr.bf16.gmra.mrb[0].mxu0 %v2282
      %v2473 = vpop.f32.mrb[0].mxu0
      %v2474 = vadd.f32 %v2333, %v2473
      %v2475 = vpop.f32.mrb[0].mxu0
      %v2476 = vpop.f32.mrb[0].mxu0
      %v2477 = vadd.f32 %v2333, %v2476
      %v2478 = vpop.f32.mrb[0].mxu0
      %2479 = vmatprep.mubr.bf16.mxu0 %v2285
      %2480 = vmatmul.mubr.bf16.gmra.mrb[0].mxu0 %v2284
      %v2481 = vpop.f32.mrb[0].mxu0
      %v2482 = vadd.f32 %v2333, %v2481
      %v2483 = vpop.f32.mrb[0].mxu0
      %v2484 = vpop.f32.mrb[0].mxu0
      %v2485 = vadd.f32 %v2333, %v2484
      %v2486 = vpop.f32.mrb[0].mxu0
      %2487 = vmatprep.mubr.bf16.mxu0 %v2287
      %2488 = vmatmul.mubr.bf16.gmra.mrb[0].mxu0 %v2286
      %v2489 = vpop.f32.mrb[0].mxu0
      %v2490 = vadd.f32 %v2333, %v2489
      %v2491 = vpop.f32.mrb[0].mxu0
      %v2492 = vpop.f32.mrb[0].mxu0
      %v2493 = vadd.f32 %v2333, %v2492
      %v2494 = vpop.f32.mrb[0].mxu0
      %2495 = vmatprep.mubr.bf16.mxu0 %v2289
      %2496 = vmatmul.mubr.bf16.gmra.mrb[0].mxu0 %v2288
      %v2497 = vpop.f32.mrb[0].mxu0
      %v2498 = vadd.f32 %v2333, %v2497
      %v2499 = vpop.f32.mrb[0].mxu0
      %v2500 = vpop.f32.mrb[0].mxu0
      %v2501 = vadd.f32 %v2333, %v2500
      %v2502 = vpop.f32.mrb[0].mxu0
      %2503 = vmatprep.mubr.bf16.mxu0 %v2291
      %2504 = vmatmul.mubr.bf16.gmra.mrb[0].mxu0 %v2290
      %v2505 = vpop.f32.mrb[0].mxu0
      %v2506 = vadd.f32 %v2333, %v2505
      %v2507 = vpop.f32.mrb[0].mxu0
      %v2508 = vpop.f32.mrb[0].mxu0
      %v2509 = vadd.f32 %v2333, %v2508
      %v2510 = vpop.f32.mrb[0].mxu0
      %2511 = vmatprep.mubr.bf16.mxu0 %v2293
      %2512 = vmatmul.mubr.bf16.gmra.mrb[0].mxu0 %v2292
      %v2513 = vpop.f32.mrb[0].mxu0
      %v2514 = vadd.f32 %v2333, %v2513
      %v2515 = vpop.f32.mrb[0].mxu0
      %v2516 = vpop.f32.mrb[0].mxu0
      %v2517 = vadd.f32 %v2333, %v2516
      %v2518 = vpop.f32.mrb[0].mxu0
      %2519 = vmatprep.mubr.bf16.mxu0 %v2295
      %2520 = vmatmul.mubr.bf16.gmra.mrb[0].mxu0 %v2294
      %v2521 = vpop.f32.mrb[0].mxu0
      %v2522 = vadd.f32 %v2333, %v2521
      %v2523 = vpop.f32.mrb[0].mxu0
      %v2524 = vpop.f32.mrb[0].mxu0
      %v2525 = vadd.f32 %v2333, %v2524
      %v2526 = vpop.f32.mrb[0].mxu0
      %2527 = vdwg.mxu0
      %vm2528 = vcmask 130048
      %2529 = vst.msk [vmem:[%s246] sm:$0xff] %vm2528, %v2466
      %2530 = vst.msk [vmem:[%s246 + $0x8] sm:$0xff] %vm2528, %v2469
      %2531 = vst.msk [vmem:[%s246 + $0x10] sm:$0xff] %vm2528, %v2474
      %2532 = vst.msk [vmem:[%s246 + $0x18] sm:$0xff] %vm2528, %v2477
      %2533 = vst.msk [vmem:[%s246 + $0x20] sm:$0xff] %vm2528, %v2482
      %2534 = vst.msk [vmem:[%s246 + $0x28] sm:$0xff] %vm2528, %v2485
      %2535 = vst.msk [vmem:[%s246 + $0x30] sm:$0xff] %vm2528, %v2490
      %2536 = vst.msk [vmem:[%s246 + $0x38] sm:$0xff] %vm2528, %v2493
      %2537 = vst.msk [vmem:[%s246 + $0x40] sm:$0xff] %vm2528, %v2498
      %2538 = vst.msk [vmem:[%s246 + $0x48] sm:$0xff] %vm2528, %v2501
      %2539 = vst.msk [vmem:[%s246 + $0x50] sm:$0xff] %vm2528, %v2506
      %2540 = vst.msk [vmem:[%s246 + $0x58] sm:$0xff] %vm2528, %v2509
      %2541 = vst.msk [vmem:[%s246 + $0x60] sm:$0xff] %vm2528, %v2514
      %2542 = vst.msk [vmem:[%s246 + $0x68] sm:$0xff] %vm2528, %v2517
      %2543 = vst.msk [vmem:[%s246 + $0x70] sm:$0xff] %vm2528, %v2522
      %2544 = vst.msk [vmem:[%s246 + $0x78] sm:$0xff] %vm2528, %v2525
      %s2545 = smul.u32 16, %s21
      %p2546 = scmp.lt.s32.totalorder %s20, 1
      %s2547 = scalar_select %p2546, %s20, 1
      %p2548 = scmp.lt.s32.totalorder %s2545, 31
      %s2549 = scalar_select %p2548, %s2545, 31
      %s2550 = smul.addr %s2547, 32
      %s2551 = sadd.s32 %s2549, %s2550
      %s2552 = smul.addr %s2551, 8
      %s2553 = scalar_lea.vmem %s5, %s2552
      // Predicated region
      $region41: #{tpu_custom_call.1} parent=39 // pred_check
        %p2554 = pneg %p158
      $region42: #{tpu_custom_call.1} parent=39 // pred_check_branch
        %2556 = sbr.rel (%p2554) target = $region44
      $region43: #{tpu_custom_call.1} parent=39 // pred_region
        %s2557 = smul.u32 16, %s21
      $region44: #{tpu_custom_call.1} parent=39 // pred_fallthru
        _
    $region40: #{tpu_custom_call.1} parent=5 // pred_fallthru
      _
    %p2558 = scmp.le.s32.totalorder 2, %s11
    // Predicated region
    $region45: #{tpu_custom_call.1} parent=5 // pred_check
      %p2559 = pneg %p2558
    $region46: #{tpu_custom_call.1} parent=5 // pred_check_branch
      %2561 = sbr.rel (%p2559) target = $region48
    $region47: #{tpu_custom_call.1} parent=5 // pred_region
      %s2562 = ssub.s32 %s11, 2
      // Predicated region
      $region49: #{tpu_custom_call.1} parent=47 // pred_check
        %p2563 = pneg %p164
      $region50: #{tpu_custom_call.1} parent=47 // pred_check_branch
        %2565 = sbr.rel (%p2563) target = $region52
      $region51: #{tpu_custom_call.1} parent=47 // pred_region
        %s2566 = smul.u32 16, %s23
        %p2567 = scmp.lt.s32.totalorder %s22, 1
        %s2568 = scalar_select %p2567, %s22, 1
        %p2569 = scmp.lt.s32.totalorder %s2566, 31
        %s2570 = scalar_select %p2569, %s2566, 31
        %s2571 = smul.addr %s2568, 32
        %s2572 = sadd.s32 %s2570, %s2571
        %s2573 = smul.addr %s2572, 8
        %s2574 = scalar_lea.vmem %s5, %s2573
      $region52: #{tpu_custom_call.1} parent=47 // pred_fallthru
        _
    $region48: #{tpu_custom_call.1} parent=5 // pred_fallthru
      _
  $region6: #{tpu_custom_call.1} parent=0 // loop_footer
    %s15 = sadd.s32 1, %s11
  $region7: #{tpu_custom_call.1} parent=0 // loop_footer_branch
    %10 = sbr.rel target = $region3
  $region8: #{tpu_custom_call.1} parent=0 // loop_exit
    _

</llo_original>
